<compile_context>
chip_gen: v7x
topology: tpu7x:2x2x1
jax: 0.10.0
libtpu: 0.0.40
codegen_flags: <defaults>
</compile_context>

<pallas_src>
import functools
import math

import jax
import jax.numpy as jnp
from jax.experimental import pallas as pl
from jax.experimental.pallas import tpu as pltpu


_VMEM_LIMIT = 48 * 1024 * 1024   # fits v7x (64 MiB physical) with headroom
_NEG_BIG = -1e30                 # finite "-inf": no inf-inf NaNs in online softmax


# ---------------------------------------------------------------------------
# helpers
# ---------------------------------------------------------------------------
def _round_up(x: int, m: int) -> int:
    return (x + m - 1) // m * m


def _largest_div(dim: int, candidates) -> int:
    """Largest candidate dividing `dim` (dims here are multiples of 128)."""
    for c in candidates:
        if dim >= c and dim % c == 0:
            return c
    return dim


def _seq_tile(s: int, target: int = 512) -> int:
    """Sequence tile: always >=128, padded-to, never a tiny fallback tile."""
    s128 = _round_up(s, 128)
    if s128 <= target:
        return s128                       # single tile covers the padded sequence
    for t in (target, target // 2, 128):
        if _round_up(s, t) - s <= max(s // 4, 127):
            return t
    return 128


# ---------------------------------------------------------------------------
# tiled matmul kernel (fused qkv projection and output projection)
# ---------------------------------------------------------------------------
def _matmul_kernel(x_ref, w_ref, o_ref, acc_ref):
    @pl.when(pl.program_id(2) == 0)
    def _init():
        acc_ref[...] = jnp.zeros_like(acc_ref)

    acc_ref[...] += jnp.dot(
        x_ref[...], w_ref[...], preferred_element_type=jnp.float32
    )

    @pl.when(pl.program_id(2) == pl.num_programs(2) - 1)
    def _store():
        o_ref[...] = acc_ref[...].astype(o_ref.dtype)


def matmul(x: jax.Array, w: jax.Array, *, out_dtype=None) -> jax.Array:
    """x: (M, K) @ w: (K, N) -> (M, N). K, N are multiples of 128 by construction."""
    M, K = x.shape
    K2, N = w.shape
    assert K == K2
    out_dtype = out_dtype if out_dtype is not None else x.dtype

    tm = min(256, _round_up(M, 8))
    Mp = _round_up(M, tm)                 # pad M up to the tile, not to 8
    if Mp != M:
        x = jnp.pad(x, ((0, Mp - M), (0, 0)))

    tn = _largest_div(N, (512, 256, 128))
    tk = _largest_div(K, (512, 256, 128))
    grid = (Mp // tm, N // tn, K // tk)

    out = pl.pallas_call(
        _matmul_kernel,
        out_shape=jax.ShapeDtypeStruct((Mp, N), out_dtype),
        grid_spec=pltpu.PrefetchScalarGridSpec(
            num_scalar_prefetch=0,
            grid=grid,
            in_specs=[
                pl.BlockSpec((tm, tk), lambda i, j, k: (i, k)),
                pl.BlockSpec((tk, tn), lambda i, j, k: (k, j)),
            ],
            out_specs=pl.BlockSpec((tm, tn), lambda i, j, k: (i, j)),
            scratch_shapes=[pltpu.VMEM((tm, tn), jnp.float32)],
        ),
        compiler_params=pltpu.CompilerParams(
            dimension_semantics=("parallel", "parallel", "arbitrary"),
            vmem_limit_bytes=_VMEM_LIMIT,
        ),
    )(x, w)

    return out[:M] if Mp != M else out


# ---------------------------------------------------------------------------
# flash-attention kernel (non-causal, GQA; reads straight from fused qkv)
# ---------------------------------------------------------------------------
def _flash_kernel(q_ref, k_ref, v_ref, o_ref, m_sc, l_sc, acc_sc,
                  *, group, head_dim, kv_len, tkv, mask_needed):
    ki = pl.program_id(3)

    @pl.when(ki == 0)
    def _init():
        m_sc[...] = jnp.full_like(m_sc, _NEG_BIG)
        l_sc[...] = jnp.zeros_like(l_sc)
        acc_sc[...] = jnp.zeros_like(acc_sc)

    k = k_ref[0]                          # (tkv, D), compute dtype (bf16)
    v = v_ref[0]                          # (tkv, D)

    if mask_needed:                       # only emitted when the sequence was padded
        kv_pos = ki * tkv + jax.lax.broadcasted_iota(jnp.int32, (1, tkv), 1)
        bias = jnp.where(kv_pos < kv_len, 0.0, _NEG_BIG).astype(jnp.float32)
        # TODO(synk): could be further gated to the last kv tile only.

    # all `group` q heads of this kv head share the K/V tile just loaded
    for h in range(group):
        lo, hi = h * head_dim, (h + 1) * head_dim
        q_h = q_ref[0, :, lo:hi]          # (tq, D); 1/sqrt(D) pre-folded into w_q
        s = jax.lax.dot_general(
            q_h, k, (((1,), (1,)), ((), ())), preferred_element_type=jnp.float32
        )                                  # (tq, tkv)
        if mask_needed:
            s = s + bias

        m_prev = m_sc[h]                  # (tq, 1)
        m_new = jnp.maximum(m_prev, jnp.max(s, axis=-1, keepdims=True))
        alpha = jnp.exp(m_prev - m_new)
        p = jnp.exp(s - m_new)
        l_sc[h] = alpha * l_sc[h] + jnp.sum(p, axis=-1, keepdims=True)
        acc_sc[:, lo:hi] = alpha * acc_sc[:, lo:hi] + jnp.dot(
            p.astype(v.dtype), v, preferred_element_type=jnp.float32
        )
        m_sc[h] = m_new

    @pl.when(ki == pl.num_programs(3) - 1)
    def _store():
        for h in range(group):
            lo, hi = h * head_dim, (h + 1) * head_dim
            inv_l = pl.reciprocal(l_sc[h], approx=True)   # EUP slot, ~free
            o_ref[0, :, lo:hi] = (acc_sc[:, lo:hi] * inv_l).astype(o_ref.dtype)


def flash_attention(qkv, *, num_q_heads, num_kv_heads, head_dim, kv_len, tq, tkv):
    """qkv: (B, Sp, (Hq + 2*Hkv)*D) fused projection -> attn out (B, Sp, Hq*D)."""
    B, Sp, _ = qkv.shape
    group = num_q_heads // num_kv_heads
    D = head_dim
    qw = group * D                          # q columns per kv group (contiguous)

    grid = (B, num_kv_heads, Sp // tq, Sp // tkv)

    def q_map(b, g, qi, ki):                # q heads g*group..(g+1)*group-1
        return (b, qi, g)

    def k_map(b, g, qi, ki):                # k head g lives after the Hq q heads
        return (b, ki, num_q_heads + g)

    def v_map(b, g, qi, ki):                # v head g after q + k heads
        return (b, ki, num_q_heads + num_kv_heads + g)

    def o_map(b, g, qi, ki):
        return (b, qi, g)

    kernel = functools.partial(
        _flash_kernel, group=group, head_dim=D, kv_len=kv_len, tkv=tkv,
        mask_needed=(kv_len < Sp),
    )

    return pl.pallas_call(
        kernel,
        out_shape=jax.ShapeDtypeStruct((B, Sp, num_q_heads * D), qkv.dtype),
        grid_spec=pltpu.PrefetchScalarGridSpec(
            num_scalar_prefetch=0,
            grid=grid,
            in_specs=[
                pl.BlockSpec((1, tq, qw), q_map),
                pl.BlockSpec((1, tkv, D), k_map),
                pl.BlockSpec((1, tkv, D), v_map),
            ],
            out_specs=pl.BlockSpec((1, tq, qw), o_map),
            scratch_shapes=[
                pltpu.VMEM((group, tq, 1), jnp.float32),   # running max per head
                pltpu.VMEM((group, tq, 1), jnp.float32),   # running denom per head
                pltpu.VMEM((tq, qw), jnp.float32),         # output accumulator
            ],
        ),
        compiler_params=pltpu.CompilerParams(
            dimension_semantics=("parallel", "parallel", "parallel", "arbitrary"),
            vmem_limit_bytes=_VMEM_LIMIT,
        ),
    )(qkv, qkv, qkv)


# ---------------------------------------------------------------------------
# full self_attn forward
# ---------------------------------------------------------------------------
def self_attn_forward(x, w_q, w_k, w_v, w_o, *, num_heads, num_kv_heads, head_dim,
                      compute_dtype=jnp.bfloat16):
    """x: (B, S, H). Weights are (in_dim, out_dim), i.e. nn.Linear W^T."""
    b, s, hidden = x.shape
    D = head_dim
    out_dtype = x.dtype
    hidden_out = w_o.shape[1]
    scale = 1.0 / math.sqrt(D)

    # TODO(synk): rotary embedding (freqs_cis) not applied — module default is freqs_cis=None.
    # TODO(synk): block_mask not supported — module default block_mask=None (full attention).

    # fold softmax scale into w_q; fuse q/k/v weights along N; cast to bf16 once
    w_qkv = jnp.concatenate([w_q * scale, w_k, w_v], axis=1).astype(compute_dtype)
    w_o_c = w_o.astype(compute_dtype)
    xc = x.astype(compute_dtype)

    # pad the sequence up to a full flash tile (>=128, divisibility-driven)
    t_s = _seq_tile(s)
    sp = _round_up(s, t_s)
    if sp != s:
        xc = jnp.pad(xc, ((0, 0), (0, sp - s), (0, 0)))

    # fused q/k/v projection: one matmul, x streamed from HBM once
    qkv = matmul(xc.reshape(b * sp, hidden), w_qkv, out_dtype=compute_dtype)
    qkv = qkv.reshape(b, sp, (num_heads + 2 * num_kv_heads) * D)

    # GQA flash attention straight out of the fused layout, output in (B, Sp, Hq*D)
    attn = flash_attention(
        qkv, num_q_heads=num_heads, num_kv_heads=num_kv_heads, head_dim=D,
        kv_len=s, tq=t_s, tkv=t_s,
    )

    out = matmul(attn.reshape(b * sp, num_heads * D), w_o_c, out_dtype=out_dtype)
    out = out.reshape(b, sp, hidden_out)
    return out[:, :s, :] if sp != s else out


# ---------------------------------------------------------------------------
# pure-JAX f32 reference (mirrors the PyTorch forward with SDPA + enable_gqa)
# ---------------------------------------------------------------------------
def reference_forward(x, w_q, w_k, w_v, w_o, *, num_heads, num_kv_heads, head_dim):
    b, s, _ = x.shape
    q = x @ w_q
    k = x @ w_k
    v = x @ w_v
    q = q.reshape(b, s, num_heads, head_dim).transpose(0, 2, 1, 3)
    k = k.reshape(b, s, num_kv_heads, head_dim).transpose(0, 2, 1, 3)
    v = v.reshape(b, s, num_kv_heads, head_dim).transpose(0, 2, 1, 3)
    group = num_heads // num_kv_heads
    k = jnp.repeat(k, group, axis=1)
    v = jnp.repeat(v, group, axis=1)
    scores = jnp.einsum("bhqd,bhkd->bhqk", q, k) / math.sqrt(head_dim)
    p = jax.nn.softmax(scores, axis=-1)
    o = jnp.einsum("bhqk,bhkd->bhqd", p, v)
    o = o.transpose(0, 2, 1, 3).reshape(b, s, num_heads * head_dim)
    return o @ w_o


# ---------------------------------------------------------------------------
if __name__ == "__main__":
    # Small but lane-dense config (the module forces dims to multiples of 128):
    batch, seq, hidden = 2, 8, 256
    num_heads, num_kv_heads, head_dim = 2, 1, 128      # GQA: 2 q heads share 1 kv head
    qk_dims = num_heads * head_dim                     # 256
    kv_dims = num_kv_heads * head_dim                  # 128

    key = jax.random.PRNGKey(0)
    kx, kq, kk, kv, ko = jax.random.split(key, 5)

    x = jax.random.normal(kx, (batch, seq, hidden), dtype=jnp.float32)
    std = 1.0 / math.sqrt(hidden)
    w_q = jax.random.normal(kq, (hidden, qk_dims), dtype=jnp.float32) * std
    w_k = jax.random.normal(kk, (hidden, kv_dims), dtype=jnp.float32) * std
    w_v = jax.random.normal(kv, (hidden, kv_dims), dtype=jnp.float32) * std
    w_o = jax.random.normal(ko, (qk_dims, hidden), dtype=jnp.float32) * (1.0 / math.sqrt(qk_dims))

    y = self_attn_forward(
        x, w_q, w_k, w_v, w_o,
        num_heads=num_heads, num_kv_heads=num_kv_heads, head_dim=head_dim,
    )
    y = jax.block_until_ready(y)

    ref = reference_forward(
        x, w_q, w_k, w_v, w_o,
        num_heads=num_heads, num_kv_heads=num_kv_heads, head_dim=head_dim,
    )
    assert y.shape == (batch, seq, hidden)
    # bf16 compute with f32 accumulation vs f32 reference
    assert jnp.allclose(y, ref, atol=3e-2, rtol=3e-2), "mismatch vs reference"

    print("KERNEL_OK")
</pallas_src>

<mosaic_0001>
module attributes {stable_mosaic.version = 11 : i64} {
  func.func @_matmul_kernel(%arg0: i32, %arg1: i32, %arg2: i32, %arg3: memref<256x256xbf16, #tpu.memory_space<vmem>>, %arg4: memref<256x512xbf16, #tpu.memory_space<vmem>>, %arg5: memref<256x512xbf16, #tpu.memory_space<vmem>>, %arg6: memref<256x512xf32, #tpu.memory_space<vmem>>) attributes {dimension_semantics = [#tpu.dimension_semantics<parallel>, #tpu.dimension_semantics<parallel>, #tpu.dimension_semantics<arbitrary>], iteration_bounds = array<i64: 1, 1, 1>, scalar_prefetch = 0 : i64, scratch_operands = 1 : i64, tpu.core_type = #tpu.core_type<tc>, window_params = [{transform_indices = @transform_0, window_bounds = array<i64: 256, 256>}, {transform_indices = @transform_1, window_bounds = array<i64: 256, 512>}, {transform_indices = @transform_2, window_bounds = array<i64: 256, 512>}]} {
    %c0_i32 = arith.constant 0 : i32
    %0 = arith.cmpi eq, %arg2, %c0_i32 : i32
    %1 = arith.extui %0 : i1 to i32
    %c0_i32_0 = arith.constant 0 : i32
    %2 = arith.cmpi ne, %1, %c0_i32_0 : i32
    scf.if %2 {
      %cst_10 = arith.constant 0.000000e+00 : f32
      %12 = vector.broadcast %cst_10 : f32 to vector<256x512xf32>
      %c0_11 = arith.constant 0 : index
      %c0_12 = arith.constant 0 : index
      %13 = vector.load %arg6[%c0_11, %c0_12] : memref<256x512xf32, #tpu.memory_space<vmem>>, vector<256x512xf32>
      tpu.vector_store %arg6[%c0_11, %c0_12], %12 {strides = array<i32>} : memref<256x512xf32, #tpu.memory_space<vmem>>, vector<256x512xf32>,
    } else {
    }
    %c0 = arith.constant 0 : index
    %c0_1 = arith.constant 0 : index
    %3 = vector.load %arg6[%c0, %c0_1] : memref<256x512xf32, #tpu.memory_space<vmem>>, vector<256x512xf32>
    %c0_2 = arith.constant 0 : index
    %c0_3 = arith.constant 0 : index
    %4 = vector.load %arg3[%c0_2, %c0_3] : memref<256x256xbf16, #tpu.memory_space<vmem>>, vector<256x256xbf16>
    %c0_4 = arith.constant 0 : index
    %c0_5 = arith.constant 0 : index
    %5 = vector.load %arg4[%c0_4, %c0_5] : memref<256x512xbf16, #tpu.memory_space<vmem>>, vector<256x512xbf16>
    %cst = arith.constant dense<0.000000e+00> : vector<256x512xf32>
    %6 = tpu.matmul %4, %5, %cst {dimension_numbers = #tpu.dot_dimension_numbers<[1], [0], [0], [1], [0, 0, 1, 1], [], []>} : vector<256x256xbf16>, vector<256x512xbf16>, vector<256x512xf32> -> vector<256x512xf32>
    %7 = arith.addf %3, %6 : vector<256x512xf32>
    %c0_6 = arith.constant 0 : index
    %c0_7 = arith.constant 0 : index
    %8 = vector.load %arg6[%c0_6, %c0_7] : memref<256x512xf32, #tpu.memory_space<vmem>>, vector<256x512xf32>
    tpu.vector_store %arg6[%c0_6, %c0_7], %7 {strides = array<i32>} : memref<256x512xf32, #tpu.memory_space<vmem>>, vector<256x512xf32>,
    %c0_i32_8 = arith.constant 0 : i32
    %9 = arith.cmpi eq, %arg2, %c0_i32_8 : i32
    %10 = arith.extui %9 : i1 to i32
    %c0_i32_9 = arith.constant 0 : i32
    %11 = arith.cmpi ne, %10, %c0_i32_9 : i32
    scf.if %11 {
      %c0_10 = arith.constant 0 : index
      %c0_11 = arith.constant 0 : index
      %12 = vector.load %arg6[%c0_10, %c0_11] : memref<256x512xf32, #tpu.memory_space<vmem>>, vector<256x512xf32>
      %13 = arith.truncf %12 : vector<256x512xf32> to vector<256x512xbf16>
      %c0_12 = arith.constant 0 : index
      %c0_13 = arith.constant 0 : index
      %14 = vector.load %arg5[%c0_12, %c0_13] : memref<256x512xbf16, #tpu.memory_space<vmem>>, vector<256x512xbf16>
      tpu.vector_store %arg5[%c0_12, %c0_13], %13 {strides = array<i32>} : memref<256x512xbf16, #tpu.memory_space<vmem>>, vector<256x512xbf16>,
    } else {
    }
    return
  }
  func.func @transform_0(%arg0: i32, %arg1: i32, %arg2: i32) -> (i32, i32) {
    %c0_i32 = arith.constant 0 : i32
    return %arg0, %arg2 : i32, i32
  }
  func.func @transform_1(%arg0: i32, %arg1: i32, %arg2: i32) -> (i32, i32) {
    %c0_i32 = arith.constant 0 : i32
    return %arg2, %arg1 : i32, i32
  }
  func.func @transform_2(%arg0: i32, %arg1: i32, %arg2: i32) -> (i32, i32) {
    %c0_i32 = arith.constant 0 : i32
    return %arg0, %arg1 : i32, i32
  }
}

</mosaic_0001>

<llo_original>
// kernel: tpu_custom_call.1
$region0: #{tpu_custom_call.1}
  #allocation0 [shape = 'u32[]', space=smem, size = 0x4, offset = 0x4, fixed_abs, tag = 'smem constant byte address 0x4 - core index']
  #allocation1 [shape = 'u32[144,128]{1,0:T(1,128)}', space=vmem, size = 0x12000, scoped, tag = 'internal scratch']
  #allocation2 [shape = 'f32[256,512]{1,0:T(8,128)}', space=vmem, size = 0x80000, scoped, tag = 'scratch operand']
  %s0 = inlined_call_operand.hbm [shape: bf16[256,256], index: 0, kind: input, shape index: {}]
  %s1 = inlined_call_operand.hbm [shape: bf16[256,512], index: 1, kind: input, shape index: {}]
  %s2 = inlined_call_operand.hbm [shape: bf16[256,512], index: 2, kind: output, shape index: {}]
  %s3 = sld [smem:[#allocation0]]
  $region34: #{tpu_custom_call.1} parent=0
    _
  %s5 = ssub.s32 1, %s3
  %s6 = scalar_select 0, %s5, %s3
  $region1: #{tpu_custom_call.1} parent=0
    #allocation3 [shape = 'u8[131072]{0}', space=vmem, size = 0x20000, scoped, tag = 'input window, operand 0, single buffered']
    #allocation4 [shape = 's32[1]{0}', space=sflag, size = 0x4, scoped, tag = 'scoped memory for tpu_custom_call.1']
    #allocation5 [shape = 's32[1]{0}', space=sflag, size = 0x4, scoped, tag = 'scoped memory for tpu_custom_call.1']
    #allocation6 [shape = 'u8[262144]{0}', space=vmem, size = 0x40000, scoped, tag = 'input window, operand 1, single buffered']
    #allocation7 [shape = 's32[1]{0}', space=sflag, size = 0x4, scoped, tag = 'scoped memory for tpu_custom_call.1']
    #allocation8 [shape = 'u8[262144]{0}', space=vmem, size = 0x40000, scoped, tag = 'output window, operand 0, single buffered']
    %7 = vsyncpa [#allocation4], 0
    %8 = vsyncpa [#allocation7], 0
    %9 = vsyncpa [#allocation5], 0
    // Predicated region
    $region2: #{tpu_custom_call.1} parent=1 // pred_check
      _
    $region3: #{tpu_custom_call.1} parent=1 // pred_check_branch
      %11 = sbr.rel (0) target = $region5
    $region4: #{tpu_custom_call.1} parent=1 // pred_region
      %s13 = ssub.s32 4096, 4096
      %14 = vsyncadd [#allocation4], %s13
      %s15 = sshll.u32 [#allocation3], 4
      %s16 = int_to_ptr.vmem [resolvable:$true] %s15
      %21 = dma.hbm_to_vmem [thread:$0]  %s0, 4096, %s16, [#allocation4], 128, 128, 8
    $region5: #{tpu_custom_call.1} parent=1 // pred_fallthru
      _
    // Predicated region
    $region6: #{tpu_custom_call.1} parent=1 // pred_check
      _
    $region7: #{tpu_custom_call.1} parent=1 // pred_check_branch
      %23 = sbr.rel (0) target = $region9
    $region8: #{tpu_custom_call.1} parent=1 // pred_region
      %s25 = ssub.s32 8192, 8192
      %26 = vsyncadd [#allocation7], %s25
      %s27 = sshll.u32 [#allocation6], 4
      %s28 = int_to_ptr.vmem [resolvable:$true] %s27
      %33 = dma.hbm_to_vmem [thread:$0]  %s1, 8192, %s28, [#allocation7], 256, 256, 16
    $region9: #{tpu_custom_call.1} parent=1 // pred_fallthru
      _
    // Predicated region
    $region10: #{tpu_custom_call.1} parent=1 // pred_check
      _
    $region11: #{tpu_custom_call.1} parent=1 // pred_check_branch
      %35 = sbr.rel (0) target = $region13
    $region12: #{tpu_custom_call.1} parent=1 // pred_region
      %36 = dma.done [#allocation4], 4096
    $region13: #{tpu_custom_call.1} parent=1 // pred_fallthru
      _
    // Predicated region
    $region14: #{tpu_custom_call.1} parent=1 // pred_check
      _
    $region15: #{tpu_custom_call.1} parent=1 // pred_check_branch
      %38 = sbr.rel (0) target = $region17
    $region16: #{tpu_custom_call.1} parent=1 // pred_region
      %39 = dma.done [#allocation7], 8192
    $region17: #{tpu_custom_call.1} parent=1 // pred_fallthru
      _
    %p40 = scmp.eq.s32.totalorder 0, 0
    // Predicated region
    $region18: #{tpu_custom_call.1} parent=1 // pred_check
      %p41 = pneg %p40
    $region19: #{tpu_custom_call.1} parent=1 // pred_check_branch
      %43 = sbr.rel (%p41) target = $region21
    $region20: #{tpu_custom_call.1} parent=1 // pred_region
      %44 = vst [vmem:[#allocation2] sm:$0xff] 0.0
      %45 = vst [vmem:[#allocation2 + $0x8] sm:$0xff] 0.0
      %46 = vst [vmem:[#allocation2 + $0x10] sm:$0xff] 0.0
      %47 = vst [vmem:[#allocation2 + $0x18] sm:$0xff] 0.0
      %48 = vst [vmem:[#allocation2 + $0x20] sm:$0xff] 0.0
      %49 = vst [vmem:[#allocation2 + $0x28] sm:$0xff] 0.0
      %50 = vst [vmem:[#allocation2 + $0x30] sm:$0xff] 0.0
      %51 = vst [vmem:[#allocation2 + $0x38] sm:$0xff] 0.0
      %52 = vst [vmem:[#allocation2 + $0x40] sm:$0xff] 0.0
      %53 = vst [vmem:[#allocation2 + $0x48] sm:$0xff] 0.0
      %54 = vst [vmem:[#allocation2 + $0x50] sm:$0xff] 0.0
      %55 = vst [vmem:[#allocation2 + $0x58] sm:$0xff] 0.0
      %56 = vst [vmem:[#allocation2 + $0x60] sm:$0xff] 0.0
      %57 = vst [vmem:[#allocation2 + $0x68] sm:$0xff] 0.0
      %58 = vst [vmem:[#allocation2 + $0x70] sm:$0xff] 0.0
      %59 = vst [vmem:[#allocation2 + $0x78] sm:$0xff] 0.0
      %60 = vst [vmem:[#allocation2 + $0x80] sm:$0xff] 0.0
      %61 = vst [vmem:[#allocation2 + $0x88] sm:$0xff] 0.0
      %62 = vst [vmem:[#allocation2 + $0x90] sm:$0xff] 0.0
      %63 = vst [vmem:[#allocation2 + $0x98] sm:$0xff] 0.0
      %64 = vst [vmem:[#allocation2 + $0xa0] sm:$0xff] 0.0
      %65 = vst [vmem:[#allocation2 + $0xa8] sm:$0xff] 0.0
      %66 = vst [vmem:[#allocation2 + $0xb0] sm:$0xff] 0.0
      %67 = vst [vmem:[#allocation2 + $0xb8] sm:$0xff] 0.0
      %68 = vst [vmem:[#allocation2 + $0xc0] sm:$0xff] 0.0
      %69 = vst [vmem:[#allocation2 + $0xc8] sm:$0xff] 0.0
      %70 = vst [vmem:[#allocation2 + $0xd0] sm:$0xff] 0.0
      %71 = vst [vmem:[#allocation2 + $0xd8] sm:$0xff] 0.0
      %72 = vst [vmem:[#allocation2 + $0xe0] sm:$0xff] 0.0
      %73 = vst [vmem:[#allocation2 + $0xe8] sm:$0xff] 0.0
      %74 = vst [vmem:[#allocation2 + $0xf0] sm:$0xff] 0.0
      %75 = vst [vmem:[#allocation2 + $0xf8] sm:$0xff] 0.0
      %76 = vst [vmem:[#allocation2 + $0x100] sm:$0xff] 0.0
      %77 = vst [vmem:[#allocation2 + $0x108] sm:$0xff] 0.0
      %78 = vst [vmem:[#allocation2 + $0x110] sm:$0xff] 0.0
      %79 = vst [vmem:[#allocation2 + $0x118] sm:$0xff] 0.0
      %80 = vst [vmem:[#allocation2 + $0x120] sm:$0xff] 0.0
      %81 = vst [vmem:[#allocation2 + $0x128] sm:$0xff] 0.0
      %82 = vst [vmem:[#allocation2 + $0x130] sm:$0xff] 0.0
      %83 = vst [vmem:[#allocation2 + $0x138] sm:$0xff] 0.0
      %84 = vst [vmem:[#allocation2 + $0x140] sm:$0xff] 0.0
      %85 = vst [vmem:[#allocation2 + $0x148] sm:$0xff] 0.0
      %86 = vst [vmem:[#allocation2 + $0x150] sm:$0xff] 0.0
      %87 = vst [vmem:[#allocation2 + $0x158] sm:$0xff] 0.0
      %88 = vst [vmem:[#allocation2 + $0x160] sm:$0xff] 0.0
      %89 = vst [vmem:[#allocation2 + $0x168] sm:$0xff] 0.0
      %90 = vst [vmem:[#allocation2 + $0x170] sm:$0xff] 0.0
      %91 = vst [vmem:[#allocation2 + $0x178] sm:$0xff] 0.0
      %92 = vst [vmem:[#allocation2 + $0x180] sm:$0xff] 0.0
      %93 = vst [vmem:[#allocation2 + $0x188] sm:$0xff] 0.0
      %94 = vst [vmem:[#allocation2 + $0x190] sm:$0xff] 0.0
      %95 = vst [vmem:[#allocation2 + $0x198] sm:$0xff] 0.0
      %96 = vst [vmem:[#allocation2 + $0x1a0] sm:$0xff] 0.0
      %97 = vst [vmem:[#allocation2 + $0x1a8] sm:$0xff] 0.0
      %98 = vst [vmem:[#allocation2 + $0x1b0] sm:$0xff] 0.0
      %99 = vst [vmem:[#allocation2 + $0x1b8] sm:$0xff] 0.0
      %100 = vst [vmem:[#allocation2 + $0x1c0] sm:$0xff] 0.0
      %101 = vst [vmem:[#allocation2 + $0x1c8] sm:$0xff] 0.0
      %102 = vst [vmem:[#allocation2 + $0x1d0] sm:$0xff] 0.0
      %103 = vst [vmem:[#allocation2 + $0x1d8] sm:$0xff] 0.0
      %104 = vst [vmem:[#allocation2 + $0x1e0] sm:$0xff] 0.0
      %105 = vst [vmem:[#allocation2 + $0x1e8] sm:$0xff] 0.0
      %106 = vst [vmem:[#allocation2 + $0x1f0] sm:$0xff] 0.0
      %107 = vst [vmem:[#allocation2 + $0x1f8] sm:$0xff] 0.0
      %108 = vst [vmem:[#allocation2 + $0x200] sm:$0xff] 0.0
      %109 = vst [vmem:[#allocation2 + $0x208] sm:$0xff] 0.0
      %110 = vst [vmem:[#allocation2 + $0x210] sm:$0xff] 0.0
      %111 = vst [vmem:[#allocation2 + $0x218] sm:$0xff] 0.0
      %112 = vst [vmem:[#allocation2 + $0x220] sm:$0xff] 0.0
      %113 = vst [vmem:[#allocation2 + $0x228] sm:$0xff] 0.0
      %114 = vst [vmem:[#allocation2 + $0x230] sm:$0xff] 0.0
      %115 = vst [vmem:[#allocation2 + $0x238] sm:$0xff] 0.0
      %116 = vst [vmem:[#allocation2 + $0x240] sm:$0xff] 0.0
      %117 = vst [vmem:[#allocation2 + $0x248] sm:$0xff] 0.0
      %118 = vst [vmem:[#allocation2 + $0x250] sm:$0xff] 0.0
      %119 = vst [vmem:[#allocation2 + $0x258] sm:$0xff] 0.0
      %120 = vst [vmem:[#allocation2 + $0x260] sm:$0xff] 0.0
      %121 = vst [vmem:[#allocation2 + $0x268] sm:$0xff] 0.0
      %122 = vst [vmem:[#allocation2 + $0x270] sm:$0xff] 0.0
      %123 = vst [vmem:[#allocation2 + $0x278] sm:$0xff] 0.0
      %124 = vst [vmem:[#allocation2 + $0x280] sm:$0xff] 0.0
      %125 = vst [vmem:[#allocation2 + $0x288] sm:$0xff] 0.0
      %126 = vst [vmem:[#allocation2 + $0x290] sm:$0xff] 0.0
      %127 = vst [vmem:[#allocation2 + $0x298] sm:$0xff] 0.0
      %128 = vst [vmem:[#allocation2 + $0x2a0] sm:$0xff] 0.0
      %129 = vst [vmem:[#allocation2 + $0x2a8] sm:$0xff] 0.0
      %130 = vst [vmem:[#allocation2 + $0x2b0] sm:$0xff] 0.0
      %131 = vst [vmem:[#allocation2 + $0x2b8] sm:$0xff] 0.0
      %132 = vst [vmem:[#allocation2 + $0x2c0] sm:$0xff] 0.0
      %133 = vst [vmem:[#allocation2 + $0x2c8] sm:$0xff] 0.0
      %134 = vst [vmem:[#allocation2 + $0x2d0] sm:$0xff] 0.0
      %135 = vst [vmem:[#allocation2 + $0x2d8] sm:$0xff] 0.0
      %136 = vst [vmem:[#allocation2 + $0x2e0] sm:$0xff] 0.0
      %137 = vst [vmem:[#allocation2 + $0x2e8] sm:$0xff] 0.0
      %138 = vst [vmem:[#allocation2 + $0x2f0] sm:$0xff] 0.0
      %139 = vst [vmem:[#allocation2 + $0x2f8] sm:$0xff] 0.0
      %140 = vst [vmem:[#allocation2 + $0x300] sm:$0xff] 0.0
      %141 = vst [vmem:[#allocation2 + $0x308] sm:$0xff] 0.0
      %142 = vst [vmem:[#allocation2 + $0x310] sm:$0xff] 0.0
      %143 = vst [vmem:[#allocation2 + $0x318] sm:$0xff] 0.0
      %144 = vst [vmem:[#allocation2 + $0x320] sm:$0xff] 0.0
      %145 = vst [vmem:[#allocation2 + $0x328] sm:$0xff] 0.0
      %146 = vst [vmem:[#allocation2 + $0x330] sm:$0xff] 0.0
      %147 = vst [vmem:[#allocation2 + $0x338] sm:$0xff] 0.0
      %148 = vst [vmem:[#allocation2 + $0x340] sm:$0xff] 0.0
      %149 = vst [vmem:[#allocation2 + $0x348] sm:$0xff] 0.0
      %150 = vst [vmem:[#allocation2 + $0x350] sm:$0xff] 0.0
      %151 = vst [vmem:[#allocation2 + $0x358] sm:$0xff] 0.0
      %152 = vst [vmem:[#allocation2 + $0x360] sm:$0xff] 0.0
      %153 = vst [vmem:[#allocation2 + $0x368] sm:$0xff] 0.0
      %154 = vst [vmem:[#allocation2 + $0x370] sm:$0xff] 0.0
      %155 = vst [vmem:[#allocation2 + $0x378] sm:$0xff] 0.0
      %156 = vst [vmem:[#allocation2 + $0x380] sm:$0xff] 0.0
      %157 = vst [vmem:[#allocation2 + $0x388] sm:$0xff] 0.0
      %158 = vst [vmem:[#allocation2 + $0x390] sm:$0xff] 0.0
      %159 = vst [vmem:[#allocation2 + $0x398] sm:$0xff] 0.0
      %160 = vst [vmem:[#allocation2 + $0x3a0] sm:$0xff] 0.0
      %161 = vst [vmem:[#allocation2 + $0x3a8] sm:$0xff] 0.0
      %162 = vst [vmem:[#allocation2 + $0x3b0] sm:$0xff] 0.0
      %163 = vst [vmem:[#allocation2 + $0x3b8] sm:$0xff] 0.0
      %164 = vst [vmem:[#allocation2 + $0x3c0] sm:$0xff] 0.0
      %165 = vst [vmem:[#allocation2 + $0x3c8] sm:$0xff] 0.0
      %166 = vst [vmem:[#allocation2 + $0x3d0] sm:$0xff] 0.0
      %167 = vst [vmem:[#allocation2 + $0x3d8] sm:$0xff] 0.0
      %168 = vst [vmem:[#allocation2 + $0x3e0] sm:$0xff] 0.0
      %169 = vst [vmem:[#allocation2 + $0x3e8] sm:$0xff] 0.0
      %170 = vst [vmem:[#allocation2 + $0x3f0] sm:$0xff] 0.0
      %171 = vst [vmem:[#allocation2 + $0x3f8] sm:$0xff] 0.0
    $region21: #{tpu_custom_call.1} parent=1 // pred_fallthru
      _
    %v172 = vld [vmem:[#allocation2] sm:$0xff]
    %v173 = vld [vmem:[#allocation2 + $0x8] sm:$0xff]
    %v174 = vld [vmem:[#allocation2 + $0x10] sm:$0xff]
    %v175 = vld [vmem:[#allocation2 + $0x18] sm:$0xff]
    %v176 = vld [vmem:[#allocation2 + $0x20] sm:$0xff]
    %v177 = vld [vmem:[#allocation2 + $0x28] sm:$0xff]
    %v178 = vld [vmem:[#allocation2 + $0x30] sm:$0xff]
    %v179 = vld [vmem:[#allocation2 + $0x38] sm:$0xff]
    %v180 = vld [vmem:[#allocation2 + $0x40] sm:$0xff]
    %v181 = vld [vmem:[#allocation2 + $0x48] sm:$0xff]
    %v182 = vld [vmem:[#allocation2 + $0x50] sm:$0xff]
    %v183 = vld [vmem:[#allocation2 + $0x58] sm:$0xff]
    %v184 = vld [vmem:[#allocation2 + $0x60] sm:$0xff]
    %v185 = vld [vmem:[#allocation2 + $0x68] sm:$0xff]
    %v186 = vld [vmem:[#allocation2 + $0x70] sm:$0xff]
    %v187 = vld [vmem:[#allocation2 + $0x78] sm:$0xff]
    %v188 = vld [vmem:[#allocation2 + $0x80] sm:$0xff]
    %v189 = vld [vmem:[#allocation2 + $0x88] sm:$0xff]
    %v190 = vld [vmem:[#allocation2 + $0x90] sm:$0xff]
    %v191 = vld [vmem:[#allocation2 + $0x98] sm:$0xff]
    %v192 = vld [vmem:[#allocation2 + $0xa0] sm:$0xff]
    %v193 = vld [vmem:[#allocation2 + $0xa8] sm:$0xff]
    %v194 = vld [vmem:[#allocation2 + $0xb0] sm:$0xff]
    %v195 = vld [vmem:[#allocation2 + $0xb8] sm:$0xff]
    %v196 = vld [vmem:[#allocation2 + $0xc0] sm:$0xff]
    %v197 = vld [vmem:[#allocation2 + $0xc8] sm:$0xff]
    %v198 = vld [vmem:[#allocation2 + $0xd0] sm:$0xff]
    %v199 = vld [vmem:[#allocation2 + $0xd8] sm:$0xff]
    %v200 = vld [vmem:[#allocation2 + $0xe0] sm:$0xff]
    %v201 = vld [vmem:[#allocation2 + $0xe8] sm:$0xff]
    %v202 = vld [vmem:[#allocation2 + $0xf0] sm:$0xff]
    %v203 = vld [vmem:[#allocation2 + $0xf8] sm:$0xff]
    %v204 = vld [vmem:[#allocation2 + $0x100] sm:$0xff]
    %v205 = vld [vmem:[#allocation2 + $0x108] sm:$0xff]
    %v206 = vld [vmem:[#allocation2 + $0x110] sm:$0xff]
    %v207 = vld [vmem:[#allocation2 + $0x118] sm:$0xff]
    %v208 = vld [vmem:[#allocation2 + $0x120] sm:$0xff]
    %v209 = vld [vmem:[#allocation2 + $0x128] sm:$0xff]
    %v210 = vld [vmem:[#allocation2 + $0x130] sm:$0xff]
    %v211 = vld [vmem:[#allocation2 + $0x138] sm:$0xff]
    %v212 = vld [vmem:[#allocation2 + $0x140] sm:$0xff]
    %v213 = vld [vmem:[#allocation2 + $0x148] sm:$0xff]
    %v214 = vld [vmem:[#allocation2 + $0x150] sm:$0xff]
    %v215 = vld [vmem:[#allocation2 + $0x158] sm:$0xff]
    %v216 = vld [vmem:[#allocation2 + $0x160] sm:$0xff]
    %v217 = vld [vmem:[#allocation2 + $0x168] sm:$0xff]
    %v218 = vld [vmem:[#allocation2 + $0x170] sm:$0xff]
    %v219 = vld [vmem:[#allocation2 + $0x178] sm:$0xff]
    %v220 = vld [vmem:[#allocation2 + $0x180] sm:$0xff]
    %v221 = vld [vmem:[#allocation2 + $0x188] sm:$0xff]
    %v222 = vld [vmem:[#allocation2 + $0x190] sm:$0xff]
    %v223 = vld [vmem:[#allocation2 + $0x198] sm:$0xff]
    %v224 = vld [vmem:[#allocation2 + $0x1a0] sm:$0xff]
    %v225 = vld [vmem:[#allocation2 + $0x1a8] sm:$0xff]
    %v226 = vld [vmem:[#allocation2 + $0x1b0] sm:$0xff]
    %v227 = vld [vmem:[#allocation2 + $0x1b8] sm:$0xff]
    %v228 = vld [vmem:[#allocation2 + $0x1c0] sm:$0xff]
    %v229 = vld [vmem:[#allocation2 + $0x1c8] sm:$0xff]
    %v230 = vld [vmem:[#allocation2 + $0x1d0] sm:$0xff]
    %v231 = vld [vmem:[#allocation2 + $0x1d8] sm:$0xff]
    %v232 = vld [vmem:[#allocation2 + $0x1e0] sm:$0xff]
    %v233 = vld [vmem:[#allocation2 + $0x1e8] sm:$0xff]
    %v234 = vld [vmem:[#allocation2 + $0x1f0] sm:$0xff]
    %v235 = vld [vmem:[#allocation2 + $0x1f8] sm:$0xff]
    %v236 = vld [vmem:[#allocation2 + $0x200] sm:$0xff]
    %v237 = vld [vmem:[#allocation2 + $0x208] sm:$0xff]
    %v238 = vld [vmem:[#allocation2 + $0x210] sm:$0xff]
    %v239 = vld [vmem:[#allocation2 + $0x218] sm:$0xff]
    %v240 = vld [vmem:[#allocation2 + $0x220] sm:$0xff]
    %v241 = vld [vmem:[#allocation2 + $0x228] sm:$0xff]
    %v242 = vld [vmem:[#allocation2 + $0x230] sm:$0xff]
    %v243 = vld [vmem:[#allocation2 + $0x238] sm:$0xff]
    %v244 = vld [vmem:[#allocation2 + $0x240] sm:$0xff]
    %v245 = vld [vmem:[#allocation2 + $0x248] sm:$0xff]
    %v246 = vld [vmem:[#allocation2 + $0x250] sm:$0xff]
    %v247 = vld [vmem:[#allocation2 + $0x258] sm:$0xff]
    %v248 = vld [vmem:[#allocation2 + $0x260] sm:$0xff]
    %v249 = vld [vmem:[#allocation2 + $0x268] sm:$0xff]
    %v250 = vld [vmem:[#allocation2 + $0x270] sm:$0xff]
    %v251 = vld [vmem:[#allocation2 + $0x278] sm:$0xff]
    %v252 = vld [vmem:[#allocation2 + $0x280] sm:$0xff]
    %v253 = vld [vmem:[#allocation2 + $0x288] sm:$0xff]
    %v254 = vld [vmem:[#allocation2 + $0x290] sm:$0xff]
    %v255 = vld [vmem:[#allocation2 + $0x298] sm:$0xff]
    %v256 = vld [vmem:[#allocation2 + $0x2a0] sm:$0xff]
    %v257 = vld [vmem:[#allocation2 + $0x2a8] sm:$0xff]
    %v258 = vld [vmem:[#allocation2 + $0x2b0] sm:$0xff]
    %v259 = vld [vmem:[#allocation2 + $0x2b8] sm:$0xff]
    %v260 = vld [vmem:[#allocation2 + $0x2c0] sm:$0xff]
    %v261 = vld [vmem:[#allocation2 + $0x2c8] sm:$0xff]
    %v262 = vld [vmem:[#allocation2 + $0x2d0] sm:$0xff]
    %v263 = vld [vmem:[#allocation2 + $0x2d8] sm:$0xff]
    %v264 = vld [vmem:[#allocation2 + $0x2e0] sm:$0xff]
    %v265 = vld [vmem:[#allocation2 + $0x2e8] sm:$0xff]
    %v266 = vld [vmem:[#allocation2 + $0x2f0] sm:$0xff]
    %v267 = vld [vmem:[#allocation2 + $0x2f8] sm:$0xff]
    %v268 = vld [vmem:[#allocation2 + $0x300] sm:$0xff]
    %v269 = vld [vmem:[#allocation2 + $0x308] sm:$0xff]
    %v270 = vld [vmem:[#allocation2 + $0x310] sm:$0xff]
    %v271 = vld [vmem:[#allocation2 + $0x318] sm:$0xff]
    %v272 = vld [vmem:[#allocation2 + $0x320] sm:$0xff]
    %v273 = vld [vmem:[#allocation2 + $0x328] sm:$0xff]
    %v274 = vld [vmem:[#allocation2 + $0x330] sm:$0xff]
    %v275 = vld [vmem:[#allocation2 + $0x338] sm:$0xff]
    %v276 = vld [vmem:[#allocation2 + $0x340] sm:$0xff]
    %v277 = vld [vmem:[#allocation2 + $0x348] sm:$0xff]
    %v278 = vld [vmem:[#allocation2 + $0x350] sm:$0xff]
    %v279 = vld [vmem:[#allocation2 + $0x358] sm:$0xff]
    %v280 = vld [vmem:[#allocation2 + $0x360] sm:$0xff]
    %v281 = vld [vmem:[#allocation2 + $0x368] sm:$0xff]
    %v282 = vld [vmem:[#allocation2 + $0x370] sm:$0xff]
    %v283 = vld [vmem:[#allocation2 + $0x378] sm:$0xff]
    %v284 = vld [vmem:[#allocation2 + $0x380] sm:$0xff]
    %v285 = vld [vmem:[#allocation2 + $0x388] sm:$0xff]
    %v286 = vld [vmem:[#allocation2 + $0x390] sm:$0xff]
    %v287 = vld [vmem:[#allocation2 + $0x398] sm:$0xff]
    %v288 = vld [vmem:[#allocation2 + $0x3a0] sm:$0xff]
    %v289 = vld [vmem:[#allocation2 + $0x3a8] sm:$0xff]
    %v290 = vld [vmem:[#allocation2 + $0x3b0] sm:$0xff]
    %v291 = vld [vmem:[#allocation2 + $0x3b8] sm:$0xff]
    %v292 = vld [vmem:[#allocation2 + $0x3c0] sm:$0xff]
    %v293 = vld [vmem:[#allocation2 + $0x3c8] sm:$0xff]
    %v294 = vld [vmem:[#allocation2 + $0x3d0] sm:$0xff]
    %v295 = vld [vmem:[#allocation2 + $0x3d8] sm:$0xff]
    %v296 = vld [vmem:[#allocation2 + $0x3e0] sm:$0xff]
    %v297 = vld [vmem:[#allocation2 + $0x3e8] sm:$0xff]
    %v298 = vld [vmem:[#allocation2 + $0x3f0] sm:$0xff]
    %v299 = vld [vmem:[#allocation2 + $0x3f8] sm:$0xff]
    %v300 = vld [vmem:[#allocation3] sm:$0xff]
    %v301 = vld [vmem:[#allocation3 + $0x8] sm:$0xff]
    %v302 = vld [vmem:[#allocation3 + $0x10] sm:$0xff]
    %v303 = vld [vmem:[#allocation3 + $0x18] sm:$0xff]
    %v304 = vld [vmem:[#allocation3 + $0x20] sm:$0xff]
    %v305 = vld [vmem:[#allocation3 + $0x28] sm:$0xff]
    %v306 = vld [vmem:[#allocation3 + $0x30] sm:$0xff]
    %v307 = vld [vmem:[#allocation3 + $0x38] sm:$0xff]
    %v308 = vld [vmem:[#allocation3 + $0x40] sm:$0xff]
    %v309 = vld [vmem:[#allocation3 + $0x48] sm:$0xff]
    %v310 = vld [vmem:[#allocation3 + $0x50] sm:$0xff]
    %v311 = vld [vmem:[#allocation3 + $0x58] sm:$0xff]
    %v312 = vld [vmem:[#allocation3 + $0x60] sm:$0xff]
    %v313 = vld [vmem:[#allocation3 + $0x68] sm:$0xff]
    %v314 = vld [vmem:[#allocation3 + $0x70] sm:$0xff]
    %v315 = vld [vmem:[#allocation3 + $0x78] sm:$0xff]
    %v316 = vld [vmem:[#allocation3 + $0x80] sm:$0xff]
    %v317 = vld [vmem:[#allocation3 + $0x88] sm:$0xff]
    %v318 = vld [vmem:[#allocation3 + $0x90] sm:$0xff]
    %v319 = vld [vmem:[#allocation3 + $0x98] sm:$0xff]
    %v320 = vld [vmem:[#allocation3 + $0xa0] sm:$0xff]
    %v321 = vld [vmem:[#allocation3 + $0xa8] sm:$0xff]
    %v322 = vld [vmem:[#allocation3 + $0xb0] sm:$0xff]
    %v323 = vld [vmem:[#allocation3 + $0xb8] sm:$0xff]
    %v324 = vld [vmem:[#allocation3 + $0xc0] sm:$0xff]
    %v325 = vld [vmem:[#allocation3 + $0xc8] sm:$0xff]
    %v326 = vld [vmem:[#allocation3 + $0xd0] sm:$0xff]
    %v327 = vld [vmem:[#allocation3 + $0xd8] sm:$0xff]
    %v328 = vld [vmem:[#allocation3 + $0xe0] sm:$0xff]
    %v329 = vld [vmem:[#allocation3 + $0xe8] sm:$0xff]
    %v330 = vld [vmem:[#allocation3 + $0xf0] sm:$0xff]
    %v331 = vld [vmem:[#allocation3 + $0xf8] sm:$0xff]
    %v332 = vld [vmem:[#allocation6] sm:$0xff]
    %v333 = vld [vmem:[#allocation6 + $0x8] sm:$0xff]
    %v334 = vld [vmem:[#allocation6 + $0x10] sm:$0xff]
    %v335 = vld [vmem:[#allocation6 + $0x18] sm:$0xff]
    %v336 = vld [vmem:[#allocation6 + $0x20] sm:$0xff]
    %v337 = vld [vmem:[#allocation6 + $0x28] sm:$0xff]
    %v338 = vld [vmem:[#allocation6 + $0x30] sm:$0xff]
    %v339 = vld [vmem:[#allocation6 + $0x38] sm:$0xff]
    %v340 = vld [vmem:[#allocation6 + $0x40] sm:$0xff]
    %v341 = vld [vmem:[#allocation6 + $0x48] sm:$0xff]
    %v342 = vld [vmem:[#allocation6 + $0x50] sm:$0xff]
    %v343 = vld [vmem:[#allocation6 + $0x58] sm:$0xff]
    %v344 = vld [vmem:[#allocation6 + $0x60] sm:$0xff]
    %v345 = vld [vmem:[#allocation6 + $0x68] sm:$0xff]
    %v346 = vld [vmem:[#allocation6 + $0x70] sm:$0xff]
    %v347 = vld [vmem:[#allocation6 + $0x78] sm:$0xff]
    %v348 = vld [vmem:[#allocation6 + $0x80] sm:$0xff]
    %v349 = vld [vmem:[#allocation6 + $0x88] sm:$0xff]
    %v350 = vld [vmem:[#allocation6 + $0x90] sm:$0xff]
    %v351 = vld [vmem:[#allocation6 + $0x98] sm:$0xff]
    %v352 = vld [vmem:[#allocation6 + $0xa0] sm:$0xff]
    %v353 = vld [vmem:[#allocation6 + $0xa8] sm:$0xff]
    %v354 = vld [vmem:[#allocation6 + $0xb0] sm:$0xff]
    %v355 = vld [vmem:[#allocation6 + $0xb8] sm:$0xff]
    %v356 = vld [vmem:[#allocation6 + $0xc0] sm:$0xff]
    %v357 = vld [vmem:[#allocation6 + $0xc8] sm:$0xff]
    %v358 = vld [vmem:[#allocation6 + $0xd0] sm:$0xff]
    %v359 = vld [vmem:[#allocation6 + $0xd8] sm:$0xff]
    %v360 = vld [vmem:[#allocation6 + $0xe0] sm:$0xff]
    %v361 = vld [vmem:[#allocation6 + $0xe8] sm:$0xff]
    %v362 = vld [vmem:[#allocation6 + $0xf0] sm:$0xff]
    %v363 = vld [vmem:[#allocation6 + $0xf8] sm:$0xff]
    %v364 = vld [vmem:[#allocation6 + $0x100] sm:$0xff]
    %v365 = vld [vmem:[#allocation6 + $0x108] sm:$0xff]
    %v366 = vld [vmem:[#allocation6 + $0x110] sm:$0xff]
    %v367 = vld [vmem:[#allocation6 + $0x118] sm:$0xff]
    %v368 = vld [vmem:[#allocation6 + $0x120] sm:$0xff]
    %v369 = vld [vmem:[#allocation6 + $0x128] sm:$0xff]
    %v370 = vld [vmem:[#allocation6 + $0x130] sm:$0xff]
    %v371 = vld [vmem:[#allocation6 + $0x138] sm:$0xff]
    %v372 = vld [vmem:[#allocation6 + $0x140] sm:$0xff]
    %v373 = vld [vmem:[#allocation6 + $0x148] sm:$0xff]
    %v374 = vld [vmem:[#allocation6 + $0x150] sm:$0xff]
    %v375 = vld [vmem:[#allocation6 + $0x158] sm:$0xff]
    %v376 = vld [vmem:[#allocation6 + $0x160] sm:$0xff]
    %v377 = vld [vmem:[#allocation6 + $0x168] sm:$0xff]
    %v378 = vld [vmem:[#allocation6 + $0x170] sm:$0xff]
    %v379 = vld [vmem:[#allocation6 + $0x178] sm:$0xff]
    %v380 = vld [vmem:[#allocation6 + $0x180] sm:$0xff]
    %v381 = vld [vmem:[#allocation6 + $0x188] sm:$0xff]
    %v382 = vld [vmem:[#allocation6 + $0x190] sm:$0xff]
    %v383 = vld [vmem:[#allocation6 + $0x198] sm:$0xff]
    %v384 = vld [vmem:[#allocation6 + $0x1a0] sm:$0xff]
    %v385 = vld [vmem:[#allocation6 + $0x1a8] sm:$0xff]
    %v386 = vld [vmem:[#allocation6 + $0x1b0] sm:$0xff]
    %v387 = vld [vmem:[#allocation6 + $0x1b8] sm:$0xff]
    %v388 = vld [vmem:[#allocation6 + $0x1c0] sm:$0xff]
    %v389 = vld [vmem:[#allocation6 + $0x1c8] sm:$0xff]
    %v390 = vld [vmem:[#allocation6 + $0x1d0] sm:$0xff]
    %v391 = vld [vmem:[#allocation6 + $0x1d8] sm:$0xff]
    %v392 = vld [vmem:[#allocation6 + $0x1e0] sm:$0xff]
    %v393 = vld [vmem:[#allocation6 + $0x1e8] sm:$0xff]
    %v394 = vld [vmem:[#allocation6 + $0x1f0] sm:$0xff]
    %v395 = vld [vmem:[#allocation6 + $0x1f8] sm:$0xff]
    %v428 = vunpack.c.l.b16 %v300
    %v429 = vunpack.c.h.b16 %v300
    %v430 = vunpack.c.l.b16 %v301
    %v431 = vunpack.c.h.b16 %v301
    %v432 = vunpack.c.l.b16 %v302
    %v433 = vunpack.c.h.b16 %v302
    %v434 = vunpack.c.l.b16 %v303
    %v435 = vunpack.c.h.b16 %v303
    %v436 = vunpack.c.l.b16 %v304
    %v437 = vunpack.c.h.b16 %v304
    %v438 = vunpack.c.l.b16 %v305
    %v439 = vunpack.c.h.b16 %v305
    %v440 = vunpack.c.l.b16 %v306
    %v441 = vunpack.c.h.b16 %v306
    %v442 = vunpack.c.l.b16 %v307
    %v443 = vunpack.c.h.b16 %v307
    %v444 = vunpack.c.l.b16 %v308
    %v445 = vunpack.c.h.b16 %v308
    %v446 = vunpack.c.l.b16 %v309
    %v447 = vunpack.c.h.b16 %v309
    %v448 = vunpack.c.l.b16 %v310
    %v449 = vunpack.c.h.b16 %v310
    %v450 = vunpack.c.l.b16 %v311
    %v451 = vunpack.c.h.b16 %v311
    %v452 = vunpack.c.l.b16 %v312
    %v453 = vunpack.c.h.b16 %v312
    %v454 = vunpack.c.l.b16 %v313
    %v455 = vunpack.c.h.b16 %v313
    %v456 = vunpack.c.l.b16 %v314
    %v457 = vunpack.c.h.b16 %v314
    %v458 = vunpack.c.l.b16 %v315
    %v459 = vunpack.c.h.b16 %v315
    %v460 = vunpack.c.l.b16 %v316
    %v461 = vunpack.c.h.b16 %v316
    %v462 = vunpack.c.l.b16 %v317
    %v463 = vunpack.c.h.b16 %v317
    %v464 = vunpack.c.l.b16 %v318
    %v465 = vunpack.c.h.b16 %v318
    %v466 = vunpack.c.l.b16 %v319
    %v467 = vunpack.c.h.b16 %v319
    %v468 = vunpack.c.l.b16 %v320
    %v469 = vunpack.c.h.b16 %v320
    %v470 = vunpack.c.l.b16 %v321
    %v471 = vunpack.c.h.b16 %v321
    %v472 = vunpack.c.l.b16 %v322
    %v473 = vunpack.c.h.b16 %v322
    %v474 = vunpack.c.l.b16 %v323
    %v475 = vunpack.c.h.b16 %v323
    %v476 = vunpack.c.l.b16 %v324
    %v477 = vunpack.c.h.b16 %v324
    %v478 = vunpack.c.l.b16 %v325
    %v479 = vunpack.c.h.b16 %v325
    %v480 = vunpack.c.l.b16 %v326
    %v481 = vunpack.c.h.b16 %v326
    %v482 = vunpack.c.l.b16 %v327
    %v483 = vunpack.c.h.b16 %v327
    %v484 = vunpack.c.l.b16 %v328
    %v485 = vunpack.c.h.b16 %v328
    %v486 = vunpack.c.l.b16 %v329
    %v487 = vunpack.c.h.b16 %v329
    %v488 = vunpack.c.l.b16 %v330
    %v489 = vunpack.c.h.b16 %v330
    %v490 = vunpack.c.l.b16 %v331
    %v491 = vunpack.c.h.b16 %v331
    %v492 = vpack.c.b16 %v430, %v428
    %v493 = vpack.c.b16 %v431, %v429
    %v494 = vpack.c.b16 %v434, %v432
    %v495 = vpack.c.b16 %v435, %v433
    %v496 = vpack.c.b16 %v438, %v436
    %v497 = vpack.c.b16 %v439, %v437
    %v498 = vpack.c.b16 %v442, %v440
    %v499 = vpack.c.b16 %v443, %v441
    %v500 = vpack.c.b16 %v446, %v444
    %v501 = vpack.c.b16 %v447, %v445
    %v502 = vpack.c.b16 %v450, %v448
    %v503 = vpack.c.b16 %v451, %v449
    %v504 = vpack.c.b16 %v454, %v452
    %v505 = vpack.c.b16 %v455, %v453
    %v506 = vpack.c.b16 %v458, %v456
    %v507 = vpack.c.b16 %v459, %v457
    %v508 = vpack.c.b16 %v462, %v460
    %v509 = vpack.c.b16 %v463, %v461
    %v510 = vpack.c.b16 %v466, %v464
    %v511 = vpack.c.b16 %v467, %v465
    %v512 = vpack.c.b16 %v470, %v468
    %v513 = vpack.c.b16 %v471, %v469
    %v514 = vpack.c.b16 %v474, %v472
    %v515 = vpack.c.b16 %v475, %v473
    %v516 = vpack.c.b16 %v478, %v476
    %v517 = vpack.c.b16 %v479, %v477
    %v518 = vpack.c.b16 %v482, %v480
    %v519 = vpack.c.b16 %v483, %v481
    %v520 = vpack.c.b16 %v486, %v484
    %v521 = vpack.c.b16 %v487, %v485
    %v522 = vpack.c.b16 %v490, %v488
    %v523 = vpack.c.b16 %v491, %v489
    %v620 = vunpack.c.l.b16 %v332
    %v621 = vunpack.c.h.b16 %v332
    %v622 = vunpack.c.l.b16 %v333
    %v623 = vunpack.c.h.b16 %v333
    %v624 = vunpack.c.l.b16 %v334
    %v625 = vunpack.c.h.b16 %v334
    %v626 = vunpack.c.l.b16 %v335
    %v627 = vunpack.c.h.b16 %v335
    %v628 = vunpack.c.l.b16 %v336
    %v629 = vunpack.c.h.b16 %v336
    %v630 = vunpack.c.l.b16 %v337
    %v631 = vunpack.c.h.b16 %v337
    %v632 = vunpack.c.l.b16 %v338
    %v633 = vunpack.c.h.b16 %v338
    %v634 = vunpack.c.l.b16 %v339
    %v635 = vunpack.c.h.b16 %v339
    %v636 = vunpack.c.l.b16 %v340
    %v637 = vunpack.c.h.b16 %v340
    %v638 = vunpack.c.l.b16 %v341
    %v639 = vunpack.c.h.b16 %v341
    %v640 = vunpack.c.l.b16 %v342
    %v641 = vunpack.c.h.b16 %v342
    %v642 = vunpack.c.l.b16 %v343
    %v643 = vunpack.c.h.b16 %v343
    %v644 = vunpack.c.l.b16 %v344
    %v645 = vunpack.c.h.b16 %v344
    %v646 = vunpack.c.l.b16 %v345
    %v647 = vunpack.c.h.b16 %v345
    %v648 = vunpack.c.l.b16 %v346
    %v649 = vunpack.c.h.b16 %v346
    %v650 = vunpack.c.l.b16 %v347
    %v651 = vunpack.c.h.b16 %v347
    %v652 = vunpack.c.l.b16 %v348
    %v653 = vunpack.c.h.b16 %v348
    %v654 = vunpack.c.l.b16 %v349
    %v655 = vunpack.c.h.b16 %v349
    %v656 = vunpack.c.l.b16 %v350
    %v657 = vunpack.c.h.b16 %v350
    %v658 = vunpack.c.l.b16 %v351
    %v659 = vunpack.c.h.b16 %v351
    %v660 = vunpack.c.l.b16 %v352
    %v661 = vunpack.c.h.b16 %v352
    %v662 = vunpack.c.l.b16 %v353
    %v663 = vunpack.c.h.b16 %v353
    %v664 = vunpack.c.l.b16 %v354
    %v665 = vunpack.c.h.b16 %v354
    %v666 = vunpack.c.l.b16 %v355
    %v667 = vunpack.c.h.b16 %v355
    %v668 = vunpack.c.l.b16 %v356
    %v669 = vunpack.c.h.b16 %v356
    %v670 = vunpack.c.l.b16 %v357
    %v671 = vunpack.c.h.b16 %v357
    %v672 = vunpack.c.l.b16 %v358
    %v673 = vunpack.c.h.b16 %v358
    %v674 = vunpack.c.l.b16 %v359
    %v675 = vunpack.c.h.b16 %v359
    %v676 = vunpack.c.l.b16 %v360
    %v677 = vunpack.c.h.b16 %v360
    %v678 = vunpack.c.l.b16 %v361
    %v679 = vunpack.c.h.b16 %v361
    %v680 = vunpack.c.l.b16 %v362
    %v681 = vunpack.c.h.b16 %v362
    %v682 = vunpack.c.l.b16 %v363
    %v683 = vunpack.c.h.b16 %v363
    %v684 = vunpack.c.l.b16 %v364
    %v685 = vunpack.c.h.b16 %v364
    %v686 = vunpack.c.l.b16 %v365
    %v687 = vunpack.c.h.b16 %v365
    %v688 = vunpack.c.l.b16 %v366
    %v689 = vunpack.c.h.b16 %v366
    %v690 = vunpack.c.l.b16 %v367
    %v691 = vunpack.c.h.b16 %v367
    %v692 = vunpack.c.l.b16 %v368
    %v693 = vunpack.c.h.b16 %v368
    %v694 = vunpack.c.l.b16 %v369
    %v695 = vunpack.c.h.b16 %v369
    %v696 = vunpack.c.l.b16 %v370
    %v697 = vunpack.c.h.b16 %v370
    %v698 = vunpack.c.l.b16 %v371
    %v699 = vunpack.c.h.b16 %v371
    %v700 = vunpack.c.l.b16 %v372
    %v701 = vunpack.c.h.b16 %v372
    %v702 = vunpack.c.l.b16 %v373
    %v703 = vunpack.c.h.b16 %v373
    %v704 = vunpack.c.l.b16 %v374
    %v705 = vunpack.c.h.b16 %v374
    %v706 = vunpack.c.l.b16 %v375
    %v707 = vunpack.c.h.b16 %v375
    %v708 = vunpack.c.l.b16 %v376
    %v709 = vunpack.c.h.b16 %v376
    %v710 = vunpack.c.l.b16 %v377
    %v711 = vunpack.c.h.b16 %v377
    %v712 = vunpack.c.l.b16 %v378
    %v713 = vunpack.c.h.b16 %v378
    %v714 = vunpack.c.l.b16 %v379
    %v715 = vunpack.c.h.b16 %v379
    %v716 = vunpack.c.l.b16 %v380
    %v717 = vunpack.c.h.b16 %v380
    %v718 = vunpack.c.l.b16 %v381
    %v719 = vunpack.c.h.b16 %v381
    %v720 = vunpack.c.l.b16 %v382
    %v721 = vunpack.c.h.b16 %v382
    %v722 = vunpack.c.l.b16 %v383
    %v723 = vunpack.c.h.b16 %v383
    %v724 = vunpack.c.l.b16 %v384
    %v725 = vunpack.c.h.b16 %v384
    %v726 = vunpack.c.l.b16 %v385
    %v727 = vunpack.c.h.b16 %v385
    %v728 = vunpack.c.l.b16 %v386
    %v729 = vunpack.c.h.b16 %v386
    %v730 = vunpack.c.l.b16 %v387
    %v731 = vunpack.c.h.b16 %v387
    %v732 = vunpack.c.l.b16 %v388
    %v733 = vunpack.c.h.b16 %v388
    %v734 = vunpack.c.l.b16 %v389
    %v735 = vunpack.c.h.b16 %v389
    %v736 = vunpack.c.l.b16 %v390
    %v737 = vunpack.c.h.b16 %v390
    %v738 = vunpack.c.l.b16 %v391
    %v739 = vunpack.c.h.b16 %v391
    %v740 = vunpack.c.l.b16 %v392
    %v741 = vunpack.c.h.b16 %v392
    %v742 = vunpack.c.l.b16 %v393
    %v743 = vunpack.c.h.b16 %v393
    %v744 = vunpack.c.l.b16 %v394
    %v745 = vunpack.c.h.b16 %v394
    %v746 = vunpack.c.l.b16 %v395
    %v747 = vunpack.c.h.b16 %v395
    %v748 = vpack.c.b16 %v624, %v620
    %v749 = vpack.c.b16 %v625, %v621
    %v750 = vpack.c.b16 %v626, %v622
    %v751 = vpack.c.b16 %v627, %v623
    %v752 = vpack.c.b16 %v632, %v628
    %v753 = vpack.c.b16 %v633, %v629
    %v754 = vpack.c.b16 %v634, %v630
    %v755 = vpack.c.b16 %v635, %v631
    %v756 = vpack.c.b16 %v640, %v636
    %v757 = vpack.c.b16 %v641, %v637
    %v758 = vpack.c.b16 %v642, %v638
    %v759 = vpack.c.b16 %v643, %v639
    %v760 = vpack.c.b16 %v648, %v644
    %v761 = vpack.c.b16 %v649, %v645
    %v762 = vpack.c.b16 %v650, %v646
    %v763 = vpack.c.b16 %v651, %v647
    %v764 = vpack.c.b16 %v656, %v652
    %v765 = vpack.c.b16 %v657, %v653
    %v766 = vpack.c.b16 %v658, %v654
    %v767 = vpack.c.b16 %v659, %v655
    %v768 = vpack.c.b16 %v664, %v660
    %v769 = vpack.c.b16 %v665, %v661
    %v770 = vpack.c.b16 %v666, %v662
    %v771 = vpack.c.b16 %v667, %v663
    %v772 = vpack.c.b16 %v672, %v668
    %v773 = vpack.c.b16 %v673, %v669
    %v774 = vpack.c.b16 %v674, %v670
    %v775 = vpack.c.b16 %v675, %v671
    %v776 = vpack.c.b16 %v680, %v676
    %v777 = vpack.c.b16 %v681, %v677
    %v778 = vpack.c.b16 %v682, %v678
    %v779 = vpack.c.b16 %v683, %v679
    %v780 = vpack.c.b16 %v688, %v684
    %v781 = vpack.c.b16 %v689, %v685
    %v782 = vpack.c.b16 %v690, %v686
    %v783 = vpack.c.b16 %v691, %v687
    %v784 = vpack.c.b16 %v696, %v692
    %v785 = vpack.c.b16 %v697, %v693
    %v786 = vpack.c.b16 %v698, %v694
    %v787 = vpack.c.b16 %v699, %v695
    %v788 = vpack.c.b16 %v704, %v700
    %v789 = vpack.c.b16 %v705, %v701
    %v790 = vpack.c.b16 %v706, %v702
    %v791 = vpack.c.b16 %v707, %v703
    %v792 = vpack.c.b16 %v712, %v708
    %v793 = vpack.c.b16 %v713, %v709
    %v794 = vpack.c.b16 %v714, %v710
    %v795 = vpack.c.b16 %v715, %v711
    %v796 = vpack.c.b16 %v720, %v716
    %v797 = vpack.c.b16 %v721, %v717
    %v798 = vpack.c.b16 %v722, %v718
    %v799 = vpack.c.b16 %v723, %v719
    %v800 = vpack.c.b16 %v728, %v724
    %v801 = vpack.c.b16 %v729, %v725
    %v802 = vpack.c.b16 %v730, %v726
    %v803 = vpack.c.b16 %v731, %v727
    %v804 = vpack.c.b16 %v736, %v732
    %v805 = vpack.c.b16 %v737, %v733
    %v806 = vpack.c.b16 %v738, %v734
    %v807 = vpack.c.b16 %v739, %v735
    %v808 = vpack.c.b16 %v744, %v740
    %v809 = vpack.c.b16 %v745, %v741
    %v810 = vpack.c.b16 %v746, %v742
    %v811 = vpack.c.b16 %v747, %v743
    %876 = vmatprep.subr.bf16.mxu0 %v749
    %877 = vmatpush1.bf16.msra.mxu0 %v748
    %878 = vmatprep.subr.bf16.mxu0 %v753
    %879 = vmatpush1.bf16.msra.mxu0 %v752
    %880 = vmatprep.subr.bf16.mxu0 %v757
    %881 = vmatpush1.bf16.msra.mxu0 %v756
    %882 = vmatprep.subr.bf16.mxu0 %v761
    %883 = vmatpush1.bf16.msra.mxu0 %v760
    %884 = vmatprep.subr.bf16.mxu0 %v765
    %885 = vmatpush1.bf16.msra.mxu0 %v764
    %886 = vmatprep.subr.bf16.mxu0 %v769
    %887 = vmatpush1.bf16.msra.mxu0 %v768
    %888 = vmatprep.subr.bf16.mxu0 %v773
    %889 = vmatpush1.bf16.msra.mxu0 %v772
    %890 = vmatprep.subr.bf16.mxu0 %v777
    %891 = vmatpush1.bf16.msra.mxu0 %v776
    %892 = vmatprep.subr.bf16.mxu0 %v781
    %893 = vmatpush1.bf16.msra.mxu0 %v780
    %894 = vmatprep.subr.bf16.mxu0 %v785
    %895 = vmatpush1.bf16.msra.mxu0 %v784
    %896 = vmatprep.subr.bf16.mxu0 %v789
    %897 = vmatpush1.bf16.msra.mxu0 %v788
    %898 = vmatprep.subr.bf16.mxu0 %v793
    %899 = vmatpush1.bf16.msra.mxu0 %v792
    %900 = vmatprep.subr.bf16.mxu0 %v797
    %901 = vmatpush1.bf16.msra.mxu0 %v796
    %902 = vmatprep.subr.bf16.mxu0 %v801
    %903 = vmatpush1.bf16.msra.mxu0 %v800
    %904 = vmatprep.subr.bf16.mxu0 %v805
    %905 = vmatpush1.bf16.msra.mxu0 %v804
    %906 = vmatprep.subr.bf16.mxu0 %v809
    %907 = vmatpush1.bf16.msra.mxu0 %v808
    %908 = vmatprep.mubr.bf16.mxu0 %v493
    %909 = vmatmul.mubr.bf16.gmra.mrb[0].mxu0 %v492
    %v910 = vpop.f32.mrb[0].mxu0
    %v911 = vadd.f32 0.0, %v910
    %v912 = vpop.f32.mrb[0].mxu0
    %v913 = vadd.f32 0.0, %v912
    %v914 = vpop.f32.mrb[0].mxu0
    %v915 = vadd.f32 0.0, %v914
    %v916 = vpop.f32.mrb[0].mxu0
    %v917 = vadd.f32 0.0, %v916
    %918 = vmatprep.mubr.bf16.mxu0 %v495
    %919 = vmatmul.mubr.bf16.gmra.mrb[0].mxu0 %v494
    %v920 = vpop.f32.mrb[0].mxu0
    %v921 = vadd.f32 0.0, %v920
    %v922 = vpop.f32.mrb[0].mxu0
    %v923 = vadd.f32 0.0, %v922
    %v924 = vpop.f32.mrb[0].mxu0
    %v925 = vadd.f32 0.0, %v924
    %v926 = vpop.f32.mrb[0].mxu0
    %v927 = vadd.f32 0.0, %v926
    %928 = vmatprep.mubr.bf16.mxu0 %v497
    %929 = vmatmul.mubr.bf16.gmra.mrb[0].mxu0 %v496
    %v930 = vpop.f32.mrb[0].mxu0
    %v931 = vadd.f32 0.0, %v930
    %v932 = vpop.f32.mrb[0].mxu0
    %v933 = vadd.f32 0.0, %v932
    %v934 = vpop.f32.mrb[0].mxu0
    %v935 = vadd.f32 0.0, %v934
    %v936 = vpop.f32.mrb[0].mxu0
    %v937 = vadd.f32 0.0, %v936
    %938 = vmatprep.mubr.bf16.mxu0 %v499
    %939 = vmatmul.mubr.bf16.gmra.mrb[0].mxu0 %v498
    %v940 = vpop.f32.mrb[0].mxu0
    %v941 = vadd.f32 0.0, %v940
    %v942 = vpop.f32.mrb[0].mxu0
    %v943 = vadd.f32 0.0, %v942
    %v944 = vpop.f32.mrb[0].mxu0
    %v945 = vadd.f32 0.0, %v944
    %v946 = vpop.f32.mrb[0].mxu0
    %v947 = vadd.f32 0.0, %v946
    %948 = vmatprep.mubr.bf16.mxu0 %v501
    %949 = vmatmul.mubr.bf16.gmra.mrb[0].mxu0 %v500
    %v950 = vpop.f32.mrb[0].mxu0
    %v951 = vadd.f32 0.0, %v950
    %v952 = vpop.f32.mrb[0].mxu0
    %v953 = vadd.f32 0.0, %v952
    %v954 = vpop.f32.mrb[0].mxu0
    %v955 = vadd.f32 0.0, %v954
    %v956 = vpop.f32.mrb[0].mxu0
    %v957 = vadd.f32 0.0, %v956
    %958 = vmatprep.mubr.bf16.mxu0 %v503
    %959 = vmatmul.mubr.bf16.gmra.mrb[0].mxu0 %v502
    %v960 = vpop.f32.mrb[0].mxu0
    %v961 = vadd.f32 0.0, %v960
    %v962 = vpop.f32.mrb[0].mxu0
    %v963 = vadd.f32 0.0, %v962
    %v964 = vpop.f32.mrb[0].mxu0
    %v965 = vadd.f32 0.0, %v964
    %v966 = vpop.f32.mrb[0].mxu0
    %v967 = vadd.f32 0.0, %v966
    %968 = vmatprep.mubr.bf16.mxu0 %v505
    %969 = vmatmul.mubr.bf16.gmra.mrb[0].mxu0 %v504
    %v970 = vpop.f32.mrb[0].mxu0
    %v971 = vadd.f32 0.0, %v970
    %v972 = vpop.f32.mrb[0].mxu0
    %v973 = vadd.f32 0.0, %v972
    %v974 = vpop.f32.mrb[0].mxu0
    %v975 = vadd.f32 0.0, %v974
    %v976 = vpop.f32.mrb[0].mxu0
    %v977 = vadd.f32 0.0, %v976
    %978 = vmatprep.mubr.bf16.mxu0 %v507
    %979 = vmatmul.mubr.bf16.gmra.mrb[0].mxu0 %v506
    %v980 = vpop.f32.mrb[0].mxu0
    %v981 = vadd.f32 0.0, %v980
    %v982 = vpop.f32.mrb[0].mxu0
    %v983 = vadd.f32 0.0, %v982
    %v984 = vpop.f32.mrb[0].mxu0
    %v985 = vadd.f32 0.0, %v984
    %v986 = vpop.f32.mrb[0].mxu0
    %v987 = vadd.f32 0.0, %v986
    %988 = vmatprep.mubr.bf16.mxu0 %v509
    %989 = vmatmul.mubr.bf16.gmra.mrb[0].mxu0 %v508
    %v990 = vpop.f32.mrb[0].mxu0
    %v991 = vadd.f32 0.0, %v990
    %v992 = vpop.f32.mrb[0].mxu0
    %v993 = vadd.f32 0.0, %v992
    %v994 = vpop.f32.mrb[0].mxu0
    %v995 = vadd.f32 0.0, %v994
    %v996 = vpop.f32.mrb[0].mxu0
    %v997 = vadd.f32 0.0, %v996
    %998 = vmatprep.mubr.bf16.mxu0 %v511
    %999 = vmatmul.mubr.bf16.gmra.mrb[0].mxu0 %v510
    %v1000 = vpop.f32.mrb[0].mxu0
    %v1001 = vadd.f32 0.0, %v1000
    %v1002 = vpop.f32.mrb[0].mxu0
    %v1003 = vadd.f32 0.0, %v1002
    %v1004 = vpop.f32.mrb[0].mxu0
    %v1005 = vadd.f32 0.0, %v1004
    %v1006 = vpop.f32.mrb[0].mxu0
    %v1007 = vadd.f32 0.0, %v1006
    %1008 = vmatprep.mubr.bf16.mxu0 %v513
    %1009 = vmatmul.mubr.bf16.gmra.mrb[0].mxu0 %v512
    %v1010 = vpop.f32.mrb[0].mxu0
    %v1011 = vadd.f32 0.0, %v1010
    %v1012 = vpop.f32.mrb[0].mxu0
    %v1013 = vadd.f32 0.0, %v1012
    %v1014 = vpop.f32.mrb[0].mxu0
    %v1015 = vadd.f32 0.0, %v1014
    %v1016 = vpop.f32.mrb[0].mxu0
    %v1017 = vadd.f32 0.0, %v1016
    %1018 = vmatprep.mubr.bf16.mxu0 %v515
    %1019 = vmatmul.mubr.bf16.gmra.mrb[0].mxu0 %v514
    %v1020 = vpop.f32.mrb[0].mxu0
    %v1021 = vadd.f32 0.0, %v1020
    %v1022 = vpop.f32.mrb[0].mxu0
    %v1023 = vadd.f32 0.0, %v1022
    %v1024 = vpop.f32.mrb[0].mxu0
    %v1025 = vadd.f32 0.0, %v1024
    %v1026 = vpop.f32.mrb[0].mxu0
    %v1027 = vadd.f32 0.0, %v1026
    %1028 = vmatprep.mubr.bf16.mxu0 %v517
    %1029 = vmatmul.mubr.bf16.gmra.mrb[0].mxu0 %v516
    %v1030 = vpop.f32.mrb[0].mxu0
    %v1031 = vadd.f32 0.0, %v1030
    %v1032 = vpop.f32.mrb[0].mxu0
    %v1033 = vadd.f32 0.0, %v1032
    %v1034 = vpop.f32.mrb[0].mxu0
    %v1035 = vadd.f32 0.0, %v1034
    %v1036 = vpop.f32.mrb[0].mxu0
    %v1037 = vadd.f32 0.0, %v1036
    %1038 = vmatprep.mubr.bf16.mxu0 %v519
    %1039 = vmatmul.mubr.bf16.gmra.mrb[0].mxu0 %v518
    %v1040 = vpop.f32.mrb[0].mxu0
    %v1041 = vadd.f32 0.0, %v1040
    %v1042 = vpop.f32.mrb[0].mxu0
    %v1043 = vadd.f32 0.0, %v1042
    %v1044 = vpop.f32.mrb[0].mxu0
    %v1045 = vadd.f32 0.0, %v1044
    %v1046 = vpop.f32.mrb[0].mxu0
    %v1047 = vadd.f32 0.0, %v1046
    %1048 = vmatprep.mubr.bf16.mxu0 %v521
    %1049 = vmatmul.mubr.bf16.gmra.mrb[0].mxu0 %v520
    %v1050 = vpop.f32.mrb[0].mxu0
    %v1051 = vadd.f32 0.0, %v1050
    %v1052 = vpop.f32.mrb[0].mxu0
    %v1053 = vadd.f32 0.0, %v1052
    %v1054 = vpop.f32.mrb[0].mxu0
    %v1055 = vadd.f32 0.0, %v1054
    %v1056 = vpop.f32.mrb[0].mxu0
    %v1057 = vadd.f32 0.0, %v1056
    %1058 = vmatprep.mubr.bf16.mxu0 %v523
    %1059 = vmatmul.mubr.bf16.gmra.mrb[0].mxu0 %v522
    %v1060 = vpop.f32.mrb[0].mxu0
    %v1061 = vadd.f32 0.0, %v1060
    %v1062 = vpop.f32.mrb[0].mxu0
    %v1063 = vadd.f32 0.0, %v1062
    %v1064 = vpop.f32.mrb[0].mxu0
    %v1065 = vadd.f32 0.0, %v1064
    %v1066 = vpop.f32.mrb[0].mxu0
    %v1067 = vadd.f32 0.0, %v1066
    %1068 = vdwg.mxu0
    %1069 = vmatprep.subr.bf16.mxu0 %v751
    %1070 = vmatpush1.bf16.msra.mxu0 %v750
    %1071 = vmatprep.subr.bf16.mxu0 %v755
    %1072 = vmatpush1.bf16.msra.mxu0 %v754
    %1073 = vmatprep.subr.bf16.mxu0 %v759
    %1074 = vmatpush1.bf16.msra.mxu0 %v758
    %1075 = vmatprep.subr.bf16.mxu0 %v763
    %1076 = vmatpush1.bf16.msra.mxu0 %v762
    %1077 = vmatprep.subr.bf16.mxu0 %v767
    %1078 = vmatpush1.bf16.msra.mxu0 %v766
    %1079 = vmatprep.subr.bf16.mxu0 %v771
    %1080 = vmatpush1.bf16.msra.mxu0 %v770
    %1081 = vmatprep.subr.bf16.mxu0 %v775
    %1082 = vmatpush1.bf16.msra.mxu0 %v774
    %1083 = vmatprep.subr.bf16.mxu0 %v779
    %1084 = vmatpush1.bf16.msra.mxu0 %v778
    %1085 = vmatprep.subr.bf16.mxu0 %v783
    %1086 = vmatpush1.bf16.msra.mxu0 %v782
    %1087 = vmatprep.subr.bf16.mxu0 %v787
    %1088 = vmatpush1.bf16.msra.mxu0 %v786
    %1089 = vmatprep.subr.bf16.mxu0 %v791
    %1090 = vmatpush1.bf16.msra.mxu0 %v790
    %1091 = vmatprep.subr.bf16.mxu0 %v795
    %1092 = vmatpush1.bf16.msra.mxu0 %v794
    %1093 = vmatprep.subr.bf16.mxu0 %v799
    %1094 = vmatpush1.bf16.msra.mxu0 %v798
    %1095 = vmatprep.subr.bf16.mxu0 %v803
    %1096 = vmatpush1.bf16.msra.mxu0 %v802
    %1097 = vmatprep.subr.bf16.mxu0 %v807
    %1098 = vmatpush1.bf16.msra.mxu0 %v806
    %1099 = vmatprep.subr.bf16.mxu0 %v811
    %1100 = vmatpush1.bf16.msra.mxu0 %v810
    %1101 = vmatprep.mubr.bf16.mxu0 %v493
    %1102 = vmatmul.mubr.bf16.gmra.mrb[0].mxu0 %v492
    %v1103 = vpop.f32.mrb[0].mxu0
    %v1104 = vadd.f32 0.0, %v1103
    %v1105 = vpop.f32.mrb[0].mxu0
    %v1106 = vadd.f32 0.0, %v1105
    %v1107 = vpop.f32.mrb[0].mxu0
    %v1108 = vadd.f32 0.0, %v1107
    %v1109 = vpop.f32.mrb[0].mxu0
    %v1110 = vadd.f32 0.0, %v1109
    %1111 = vmatprep.mubr.bf16.mxu0 %v495
    %1112 = vmatmul.mubr.bf16.gmra.mrb[0].mxu0 %v494
    %v1113 = vpop.f32.mrb[0].mxu0
    %v1114 = vadd.f32 0.0, %v1113
    %v1115 = vpop.f32.mrb[0].mxu0
    %v1116 = vadd.f32 0.0, %v1115
    %v1117 = vpop.f32.mrb[0].mxu0
    %v1118 = vadd.f32 0.0, %v1117
    %v1119 = vpop.f32.mrb[0].mxu0
    %v1120 = vadd.f32 0.0, %v1119
    %1121 = vmatprep.mubr.bf16.mxu0 %v497
    %1122 = vmatmul.mubr.bf16.gmra.mrb[0].mxu0 %v496
    %v1123 = vpop.f32.mrb[0].mxu0
    %v1124 = vadd.f32 0.0, %v1123
    %v1125 = vpop.f32.mrb[0].mxu0
    %v1126 = vadd.f32 0.0, %v1125
    %v1127 = vpop.f32.mrb[0].mxu0
    %v1128 = vadd.f32 0.0, %v1127
    %v1129 = vpop.f32.mrb[0].mxu0
    %v1130 = vadd.f32 0.0, %v1129
    %1131 = vmatprep.mubr.bf16.mxu0 %v499
    %1132 = vmatmul.mubr.bf16.gmra.mrb[0].mxu0 %v498
    %v1133 = vpop.f32.mrb[0].mxu0
    %v1134 = vadd.f32 0.0, %v1133
    %v1135 = vpop.f32.mrb[0].mxu0
    %v1136 = vadd.f32 0.0, %v1135
    %v1137 = vpop.f32.mrb[0].mxu0
    %v1138 = vadd.f32 0.0, %v1137
    %v1139 = vpop.f32.mrb[0].mxu0
    %v1140 = vadd.f32 0.0, %v1139
    %1141 = vmatprep.mubr.bf16.mxu0 %v501
    %1142 = vmatmul.mubr.bf16.gmra.mrb[0].mxu0 %v500
    %v1143 = vpop.f32.mrb[0].mxu0
    %v1144 = vadd.f32 0.0, %v1143
    %v1145 = vpop.f32.mrb[0].mxu0
    %v1146 = vadd.f32 0.0, %v1145
    %v1147 = vpop.f32.mrb[0].mxu0
    %v1148 = vadd.f32 0.0, %v1147
    %v1149 = vpop.f32.mrb[0].mxu0
    %v1150 = vadd.f32 0.0, %v1149
    %1151 = vmatprep.mubr.bf16.mxu0 %v503
    %1152 = vmatmul.mubr.bf16.gmra.mrb[0].mxu0 %v502
    %v1153 = vpop.f32.mrb[0].mxu0
    %v1154 = vadd.f32 0.0, %v1153
    %v1155 = vpop.f32.mrb[0].mxu0
    %v1156 = vadd.f32 0.0, %v1155
    %v1157 = vpop.f32.mrb[0].mxu0
    %v1158 = vadd.f32 0.0, %v1157
    %v1159 = vpop.f32.mrb[0].mxu0
    %v1160 = vadd.f32 0.0, %v1159
    %1161 = vmatprep.mubr.bf16.mxu0 %v505
    %1162 = vmatmul.mubr.bf16.gmra.mrb[0].mxu0 %v504
    %v1163 = vpop.f32.mrb[0].mxu0
    %v1164 = vadd.f32 0.0, %v1163
    %v1165 = vpop.f32.mrb[0].mxu0
    %v1166 = vadd.f32 0.0, %v1165
    %v1167 = vpop.f32.mrb[0].mxu0
    %v1168 = vadd.f32 0.0, %v1167
    %v1169 = vpop.f32.mrb[0].mxu0
    %v1170 = vadd.f32 0.0, %v1169
    %1171 = vmatprep.mubr.bf16.mxu0 %v507
    %1172 = vmatmul.mubr.bf16.gmra.mrb[0].mxu0 %v506
    %v1173 = vpop.f32.mrb[0].mxu0
    %v1174 = vadd.f32 0.0, %v1173
    %v1175 = vpop.f32.mrb[0].mxu0
    %v1176 = vadd.f32 0.0, %v1175
    %v1177 = vpop.f32.mrb[0].mxu0
    %v1178 = vadd.f32 0.0, %v1177
    %v1179 = vpop.f32.mrb[0].mxu0
    %v1180 = vadd.f32 0.0, %v1179
    %1181 = vmatprep.mubr.bf16.mxu0 %v509
    %1182 = vmatmul.mubr.bf16.gmra.mrb[0].mxu0 %v508
    %v1183 = vpop.f32.mrb[0].mxu0
    %v1184 = vadd.f32 0.0, %v1183
    %v1185 = vpop.f32.mrb[0].mxu0
    %v1186 = vadd.f32 0.0, %v1185
    %v1187 = vpop.f32.mrb[0].mxu0
    %v1188 = vadd.f32 0.0, %v1187
    %v1189 = vpop.f32.mrb[0].mxu0
    %v1190 = vadd.f32 0.0, %v1189
    %1191 = vmatprep.mubr.bf16.mxu0 %v511
    %1192 = vmatmul.mubr.bf16.gmra.mrb[0].mxu0 %v510
    %v1193 = vpop.f32.mrb[0].mxu0
    %v1194 = vadd.f32 0.0, %v1193
    %v1195 = vpop.f32.mrb[0].mxu0
    %v1196 = vadd.f32 0.0, %v1195
    %v1197 = vpop.f32.mrb[0].mxu0
    %v1198 = vadd.f32 0.0, %v1197
    %v1199 = vpop.f32.mrb[0].mxu0
    %v1200 = vadd.f32 0.0, %v1199
    %1201 = vmatprep.mubr.bf16.mxu0 %v513
    %1202 = vmatmul.mubr.bf16.gmra.mrb[0].mxu0 %v512
    %v1203 = vpop.f32.mrb[0].mxu0
    %v1204 = vadd.f32 0.0, %v1203
    %v1205 = vpop.f32.mrb[0].mxu0
    %v1206 = vadd.f32 0.0, %v1205
    %v1207 = vpop.f32.mrb[0].mxu0
    %v1208 = vadd.f32 0.0, %v1207
    %v1209 = vpop.f32.mrb[0].mxu0
    %v1210 = vadd.f32 0.0, %v1209
    %1211 = vmatprep.mubr.bf16.mxu0 %v515
    %1212 = vmatmul.mubr.bf16.gmra.mrb[0].mxu0 %v514
    %v1213 = vpop.f32.mrb[0].mxu0
    %v1214 = vadd.f32 0.0, %v1213
    %v1215 = vpop.f32.mrb[0].mxu0
    %v1216 = vadd.f32 0.0, %v1215
    %v1217 = vpop.f32.mrb[0].mxu0
    %v1218 = vadd.f32 0.0, %v1217
    %v1219 = vpop.f32.mrb[0].mxu0
    %v1220 = vadd.f32 0.0, %v1219
    %1221 = vmatprep.mubr.bf16.mxu0 %v517
    %1222 = vmatmul.mubr.bf16.gmra.mrb[0].mxu0 %v516
    %v1223 = vpop.f32.mrb[0].mxu0
    %v1224 = vadd.f32 0.0, %v1223
    %v1225 = vpop.f32.mrb[0].mxu0
    %v1226 = vadd.f32 0.0, %v1225
    %v1227 = vpop.f32.mrb[0].mxu0
    %v1228 = vadd.f32 0.0, %v1227
    %v1229 = vpop.f32.mrb[0].mxu0
    %v1230 = vadd.f32 0.0, %v1229
    %1231 = vmatprep.mubr.bf16.mxu0 %v519
    %1232 = vmatmul.mubr.bf16.gmra.mrb[0].mxu0 %v518
    %v1233 = vpop.f32.mrb[0].mxu0
    %v1234 = vadd.f32 0.0, %v1233
    %v1235 = vpop.f32.mrb[0].mxu0
    %v1236 = vadd.f32 0.0, %v1235
    %v1237 = vpop.f32.mrb[0].mxu0
    %v1238 = vadd.f32 0.0, %v1237
    %v1239 = vpop.f32.mrb[0].mxu0
    %v1240 = vadd.f32 0.0, %v1239
    %1241 = vmatprep.mubr.bf16.mxu0 %v521
    %1242 = vmatmul.mubr.bf16.gmra.mrb[0].mxu0 %v520
    %v1243 = vpop.f32.mrb[0].mxu0
    %v1244 = vadd.f32 0.0, %v1243
    %v1245 = vpop.f32.mrb[0].mxu0
    %v1246 = vadd.f32 0.0, %v1245
    %v1247 = vpop.f32.mrb[0].mxu0
    %v1248 = vadd.f32 0.0, %v1247
    %v1249 = vpop.f32.mrb[0].mxu0
    %v1250 = vadd.f32 0.0, %v1249
    %1251 = vmatprep.mubr.bf16.mxu0 %v523
    %1252 = vmatmul.mubr.bf16.gmra.mrb[0].mxu0 %v522
    %v1253 = vpop.f32.mrb[0].mxu0
    %v1254 = vadd.f32 0.0, %v1253
    %v1255 = vpop.f32.mrb[0].mxu0
    %v1256 = vadd.f32 0.0, %v1255
    %v1257 = vpop.f32.mrb[0].mxu0
    %v1258 = vadd.f32 0.0, %v1257
    %v1259 = vpop.f32.mrb[0].mxu0
    %v1260 = vadd.f32 0.0, %v1259
    %1261 = vdwg.mxu0
    %v1262 = vadd.f32 %v172, %v911
    %v1263 = vadd.f32 %v173, %v913
    %v1264 = vadd.f32 %v174, %v1104
    %v1265 = vadd.f32 %v175, %v1106
    %v1266 = vadd.f32 %v176, %v915
    %v1267 = vadd.f32 %v177, %v917
    %v1268 = vadd.f32 %v178, %v1108
    %v1269 = vadd.f32 %v179, %v1110
    %v1270 = vadd.f32 %v180, %v921
    %v1271 = vadd.f32 %v181, %v923
    %v1272 = vadd.f32 %v182, %v1114
    %v1273 = vadd.f32 %v183, %v1116
    %v1274 = vadd.f32 %v184, %v925
    %v1275 = vadd.f32 %v185, %v927
    %v1276 = vadd.f32 %v186, %v1118
    %v1277 = vadd.f32 %v187, %v1120
    %v1278 = vadd.f32 %v188, %v931
    %v1279 = vadd.f32 %v189, %v933
    %v1280 = vadd.f32 %v190, %v1124
    %v1281 = vadd.f32 %v191, %v1126
    %v1282 = vadd.f32 %v192, %v935
    %v1283 = vadd.f32 %v193, %v937
    %v1284 = vadd.f32 %v194, %v1128
    %v1285 = vadd.f32 %v195, %v1130
    %v1286 = vadd.f32 %v196, %v941
    %v1287 = vadd.f32 %v197, %v943
    %v1288 = vadd.f32 %v198, %v1134
    %v1289 = vadd.f32 %v199, %v1136
    %v1290 = vadd.f32 %v200, %v945
    %v1291 = vadd.f32 %v201, %v947
    %v1292 = vadd.f32 %v202, %v1138
    %v1293 = vadd.f32 %v203, %v1140
    %v1294 = vadd.f32 %v204, %v951
    %v1295 = vadd.f32 %v205, %v953
    %v1296 = vadd.f32 %v206, %v1144
    %v1297 = vadd.f32 %v207, %v1146
    %v1298 = vadd.f32 %v208, %v955
    %v1299 = vadd.f32 %v209, %v957
    %v1300 = vadd.f32 %v210, %v1148
    %v1301 = vadd.f32 %v211, %v1150
    %v1302 = vadd.f32 %v212, %v961
    %v1303 = vadd.f32 %v213, %v963
    %v1304 = vadd.f32 %v214, %v1154
    %v1305 = vadd.f32 %v215, %v1156
    %v1306 = vadd.f32 %v216, %v965
    %v1307 = vadd.f32 %v217, %v967
    %v1308 = vadd.f32 %v218, %v1158
    %v1309 = vadd.f32 %v219, %v1160
    %v1310 = vadd.f32 %v220, %v971
    %v1311 = vadd.f32 %v221, %v973
    %v1312 = vadd.f32 %v222, %v1164
    %v1313 = vadd.f32 %v223, %v1166
    %v1314 = vadd.f32 %v224, %v975
    %v1315 = vadd.f32 %v225, %v977
    %v1316 = vadd.f32 %v226, %v1168
    %v1317 = vadd.f32 %v227, %v1170
    %v1318 = vadd.f32 %v228, %v981
    %v1319 = vadd.f32 %v229, %v983
    %v1320 = vadd.f32 %v230, %v1174
    %v1321 = vadd.f32 %v231, %v1176
    %v1322 = vadd.f32 %v232, %v985
    %v1323 = vadd.f32 %v233, %v987
    %v1324 = vadd.f32 %v234, %v1178
    %v1325 = vadd.f32 %v235, %v1180
    %v1326 = vadd.f32 %v236, %v991
    %v1327 = vadd.f32 %v237, %v993
    %v1328 = vadd.f32 %v238, %v1184
    %v1329 = vadd.f32 %v239, %v1186
    %v1330 = vadd.f32 %v240, %v995
    %v1331 = vadd.f32 %v241, %v997
    %v1332 = vadd.f32 %v242, %v1188
    %v1333 = vadd.f32 %v243, %v1190
    %v1334 = vadd.f32 %v244, %v1001
    %v1335 = vadd.f32 %v245, %v1003
    %v1336 = vadd.f32 %v246, %v1194
    %v1337 = vadd.f32 %v247, %v1196
    %v1338 = vadd.f32 %v248, %v1005
    %v1339 = vadd.f32 %v249, %v1007
    %v1340 = vadd.f32 %v250, %v1198
    %v1341 = vadd.f32 %v251, %v1200
    %v1342 = vadd.f32 %v252, %v1011
    %v1343 = vadd.f32 %v253, %v1013
    %v1344 = vadd.f32 %v254, %v1204
    %v1345 = vadd.f32 %v255, %v1206
    %v1346 = vadd.f32 %v256, %v1015
    %v1347 = vadd.f32 %v257, %v1017
    %v1348 = vadd.f32 %v258, %v1208
    %v1349 = vadd.f32 %v259, %v1210
    %v1350 = vadd.f32 %v260, %v1021
    %v1351 = vadd.f32 %v261, %v1023
    %v1352 = vadd.f32 %v262, %v1214
    %v1353 = vadd.f32 %v263, %v1216
    %v1354 = vadd.f32 %v264, %v1025
    %v1355 = vadd.f32 %v265, %v1027
    %v1356 = vadd.f32 %v266, %v1218
    %v1357 = vadd.f32 %v267, %v1220
    %v1358 = vadd.f32 %v268, %v1031
    %v1359 = vadd.f32 %v269, %v1033
    %v1360 = vadd.f32 %v270, %v1224
    %v1361 = vadd.f32 %v271, %v1226
    %v1362 = vadd.f32 %v272, %v1035
    %v1363 = vadd.f32 %v273, %v1037
    %v1364 = vadd.f32 %v274, %v1228
    %v1365 = vadd.f32 %v275, %v1230
    %v1366 = vadd.f32 %v276, %v1041
    %v1367 = vadd.f32 %v277, %v1043
    %v1368 = vadd.f32 %v278, %v1234
    %v1369 = vadd.f32 %v279, %v1236
    %v1370 = vadd.f32 %v280, %v1045
    %v1371 = vadd.f32 %v281, %v1047
    %v1372 = vadd.f32 %v282, %v1238
    %v1373 = vadd.f32 %v283, %v1240
    %v1374 = vadd.f32 %v284, %v1051
    %v1375 = vadd.f32 %v285, %v1053
    %v1376 = vadd.f32 %v286, %v1244
    %v1377 = vadd.f32 %v287, %v1246
    %v1378 = vadd.f32 %v288, %v1055
    %v1379 = vadd.f32 %v289, %v1057
    %v1380 = vadd.f32 %v290, %v1248
    %v1381 = vadd.f32 %v291, %v1250
    %v1382 = vadd.f32 %v292, %v1061
    %v1383 = vadd.f32 %v293, %v1063
    %v1384 = vadd.f32 %v294, %v1254
    %v1385 = vadd.f32 %v295, %v1256
    %v1386 = vadd.f32 %v296, %v1065
    %v1387 = vadd.f32 %v297, %v1067
    %v1388 = vadd.f32 %v298, %v1258
    %v1389 = vadd.f32 %v299, %v1260
    %1390 = vst [vmem:[#allocation2] sm:$0xff] %v1262
    %1391 = vst [vmem:[#allocation2 + $0x8] sm:$0xff] %v1263
    %1392 = vst [vmem:[#allocation2 + $0x10] sm:$0xff] %v1264
    %1393 = vst [vmem:[#allocation2 + $0x18] sm:$0xff] %v1265
    %1394 = vst [vmem:[#allocation2 + $0x20] sm:$0xff] %v1266
    %1395 = vst [vmem:[#allocation2 + $0x28] sm:$0xff] %v1267
    %1396 = vst [vmem:[#allocation2 + $0x30] sm:$0xff] %v1268
    %1397 = vst [vmem:[#allocation2 + $0x38] sm:$0xff] %v1269
    %1398 = vst [vmem:[#allocation2 + $0x40] sm:$0xff] %v1270
    %1399 = vst [vmem:[#allocation2 + $0x48] sm:$0xff] %v1271
    %1400 = vst [vmem:[#allocation2 + $0x50] sm:$0xff] %v1272
    %1401 = vst [vmem:[#allocation2 + $0x58] sm:$0xff] %v1273
    %1402 = vst [vmem:[#allocation2 + $0x60] sm:$0xff] %v1274
    %1403 = vst [vmem:[#allocation2 + $0x68] sm:$0xff] %v1275
    %1404 = vst [vmem:[#allocation2 + $0x70] sm:$0xff] %v1276
    %1405 = vst [vmem:[#allocation2 + $0x78] sm:$0xff] %v1277
    %1406 = vst [vmem:[#allocation2 + $0x80] sm:$0xff] %v1278
    %1407 = vst [vmem:[#allocation2 + $0x88] sm:$0xff] %v1279
    %1408 = vst [vmem:[#allocation2 + $0x90] sm:$0xff] %v1280
    %1409 = vst [vmem:[#allocation2 + $0x98] sm:$0xff] %v1281
    %1410 = vst [vmem:[#allocation2 + $0xa0] sm:$0xff] %v1282
    %1411 = vst [vmem:[#allocation2 + $0xa8] sm:$0xff] %v1283
    %1412 = vst [vmem:[#allocation2 + $0xb0] sm:$0xff] %v1284
    %1413 = vst [vmem:[#allocation2 + $0xb8] sm:$0xff] %v1285
    %1414 = vst [vmem:[#allocation2 + $0xc0] sm:$0xff] %v1286
    %1415 = vst [vmem:[#allocation2 + $0xc8] sm:$0xff] %v1287
    %1416 = vst [vmem:[#allocation2 + $0xd0] sm:$0xff] %v1288
    %1417 = vst [vmem:[#allocation2 + $0xd8] sm:$0xff] %v1289
    %1418 = vst [vmem:[#allocation2 + $0xe0] sm:$0xff] %v1290
    %1419 = vst [vmem:[#allocation2 + $0xe8] sm:$0xff] %v1291
    %1420 = vst [vmem:[#allocation2 + $0xf0] sm:$0xff] %v1292
    %1421 = vst [vmem:[#allocation2 + $0xf8] sm:$0xff] %v1293
    %1422 = vst [vmem:[#allocation2 + $0x100] sm:$0xff] %v1294
    %1423 = vst [vmem:[#allocation2 + $0x108] sm:$0xff] %v1295
    %1424 = vst [vmem:[#allocation2 + $0x110] sm:$0xff] %v1296
    %1425 = vst [vmem:[#allocation2 + $0x118] sm:$0xff] %v1297
    %1426 = vst [vmem:[#allocation2 + $0x120] sm:$0xff] %v1298
    %1427 = vst [vmem:[#allocation2 + $0x128] sm:$0xff] %v1299
    %1428 = vst [vmem:[#allocation2 + $0x130] sm:$0xff] %v1300
    %1429 = vst [vmem:[#allocation2 + $0x138] sm:$0xff] %v1301
    %1430 = vst [vmem:[#allocation2 + $0x140] sm:$0xff] %v1302
    %1431 = vst [vmem:[#allocation2 + $0x148] sm:$0xff] %v1303
    %1432 = vst [vmem:[#allocation2 + $0x150] sm:$0xff] %v1304
    %1433 = vst [vmem:[#allocation2 + $0x158] sm:$0xff] %v1305
    %1434 = vst [vmem:[#allocation2 + $0x160] sm:$0xff] %v1306
    %1435 = vst [vmem:[#allocation2 + $0x168] sm:$0xff] %v1307
    %1436 = vst [vmem:[#allocation2 + $0x170] sm:$0xff] %v1308
    %1437 = vst [vmem:[#allocation2 + $0x178] sm:$0xff] %v1309
    %1438 = vst [vmem:[#allocation2 + $0x180] sm:$0xff] %v1310
    %1439 = vst [vmem:[#allocation2 + $0x188] sm:$0xff] %v1311
    %1440 = vst [vmem:[#allocation2 + $0x190] sm:$0xff] %v1312
    %1441 = vst [vmem:[#allocation2 + $0x198] sm:$0xff] %v1313
    %1442 = vst [vmem:[#allocation2 + $0x1a0] sm:$0xff] %v1314
    %1443 = vst [vmem:[#allocation2 + $0x1a8] sm:$0xff] %v1315
    %1444 = vst [vmem:[#allocation2 + $0x1b0] sm:$0xff] %v1316
    %1445 = vst [vmem:[#allocation2 + $0x1b8] sm:$0xff] %v1317
    %1446 = vst [vmem:[#allocation2 + $0x1c0] sm:$0xff] %v1318
    %1447 = vst [vmem:[#allocation2 + $0x1c8] sm:$0xff] %v1319
    %1448 = vst [vmem:[#allocation2 + $0x1d0] sm:$0xff] %v1320
    %1449 = vst [vmem:[#allocation2 + $0x1d8] sm:$0xff] %v1321
    %1450 = vst [vmem:[#allocation2 + $0x1e0] sm:$0xff] %v1322
    %1451 = vst [vmem:[#allocation2 + $0x1e8] sm:$0xff] %v1323
    %1452 = vst [vmem:[#allocation2 + $0x1f0] sm:$0xff] %v1324
    %1453 = vst [vmem:[#allocation2 + $0x1f8] sm:$0xff] %v1325
    %1454 = vst [vmem:[#allocation2 + $0x200] sm:$0xff] %v1326
    %1455 = vst [vmem:[#allocation2 + $0x208] sm:$0xff] %v1327
    %1456 = vst [vmem:[#allocation2 + $0x210] sm:$0xff] %v1328
    %1457 = vst [vmem:[#allocation2 + $0x218] sm:$0xff] %v1329
    %1458 = vst [vmem:[#allocation2 + $0x220] sm:$0xff] %v1330
    %1459 = vst [vmem:[#allocation2 + $0x228] sm:$0xff] %v1331
    %1460 = vst [vmem:[#allocation2 + $0x230] sm:$0xff] %v1332
    %1461 = vst [vmem:[#allocation2 + $0x238] sm:$0xff] %v1333
    %1462 = vst [vmem:[#allocation2 + $0x240] sm:$0xff] %v1334
    %1463 = vst [vmem:[#allocation2 + $0x248] sm:$0xff] %v1335
    %1464 = vst [vmem:[#allocation2 + $0x250] sm:$0xff] %v1336
    %1465 = vst [vmem:[#allocation2 + $0x258] sm:$0xff] %v1337
    %1466 = vst [vmem:[#allocation2 + $0x260] sm:$0xff] %v1338
    %1467 = vst [vmem:[#allocation2 + $0x268] sm:$0xff] %v1339
    %1468 = vst [vmem:[#allocation2 + $0x270] sm:$0xff] %v1340
    %1469 = vst [vmem:[#allocation2 + $0x278] sm:$0xff] %v1341
    %1470 = vst [vmem:[#allocation2 + $0x280] sm:$0xff] %v1342
    %1471 = vst [vmem:[#allocation2 + $0x288] sm:$0xff] %v1343
    %1472 = vst [vmem:[#allocation2 + $0x290] sm:$0xff] %v1344
    %1473 = vst [vmem:[#allocation2 + $0x298] sm:$0xff] %v1345
    %1474 = vst [vmem:[#allocation2 + $0x2a0] sm:$0xff] %v1346
    %1475 = vst [vmem:[#allocation2 + $0x2a8] sm:$0xff] %v1347
    %1476 = vst [vmem:[#allocation2 + $0x2b0] sm:$0xff] %v1348
    %1477 = vst [vmem:[#allocation2 + $0x2b8] sm:$0xff] %v1349
    %1478 = vst [vmem:[#allocation2 + $0x2c0] sm:$0xff] %v1350
    %1479 = vst [vmem:[#allocation2 + $0x2c8] sm:$0xff] %v1351
    %1480 = vst [vmem:[#allocation2 + $0x2d0] sm:$0xff] %v1352
    %1481 = vst [vmem:[#allocation2 + $0x2d8] sm:$0xff] %v1353
    %1482 = vst [vmem:[#allocation2 + $0x2e0] sm:$0xff] %v1354
    %1483 = vst [vmem:[#allocation2 + $0x2e8] sm:$0xff] %v1355
    %1484 = vst [vmem:[#allocation2 + $0x2f0] sm:$0xff] %v1356
    %1485 = vst [vmem:[#allocation2 + $0x2f8] sm:$0xff] %v1357
    %1486 = vst [vmem:[#allocation2 + $0x300] sm:$0xff] %v1358
    %1487 = vst [vmem:[#allocation2 + $0x308] sm:$0xff] %v1359
    %1488 = vst [vmem:[#allocation2 + $0x310] sm:$0xff] %v1360
    %1489 = vst [vmem:[#allocation2 + $0x318] sm:$0xff] %v1361
    %1490 = vst [vmem:[#allocation2 + $0x320] sm:$0xff] %v1362
    %1491 = vst [vmem:[#allocation2 + $0x328] sm:$0xff] %v1363
    %1492 = vst [vmem:[#allocation2 + $0x330] sm:$0xff] %v1364
    %1493 = vst [vmem:[#allocation2 + $0x338] sm:$0xff] %v1365
    %1494 = vst [vmem:[#allocation2 + $0x340] sm:$0xff] %v1366
    %1495 = vst [vmem:[#allocation2 + $0x348] sm:$0xff] %v1367
    %1496 = vst [vmem:[#allocation2 + $0x350] sm:$0xff] %v1368
    %1497 = vst [vmem:[#allocation2 + $0x358] sm:$0xff] %v1369
    %1498 = vst [vmem:[#allocation2 + $0x360] sm:$0xff] %v1370
    %1499 = vst [vmem:[#allocation2 + $0x368] sm:$0xff] %v1371
    %1500 = vst [vmem:[#allocation2 + $0x370] sm:$0xff] %v1372
    %1501 = vst [vmem:[#allocation2 + $0x378] sm:$0xff] %v1373
    %1502 = vst [vmem:[#allocation2 + $0x380] sm:$0xff] %v1374
    %1503 = vst [vmem:[#allocation2 + $0x388] sm:$0xff] %v1375
    %1504 = vst [vmem:[#allocation2 + $0x390] sm:$0xff] %v1376
    %1505 = vst [vmem:[#allocation2 + $0x398] sm:$0xff] %v1377
    %1506 = vst [vmem:[#allocation2 + $0x3a0] sm:$0xff] %v1378
    %1507 = vst [vmem:[#allocation2 + $0x3a8] sm:$0xff] %v1379
    %1508 = vst [vmem:[#allocation2 + $0x3b0] sm:$0xff] %v1380
    %1509 = vst [vmem:[#allocation2 + $0x3b8] sm:$0xff] %v1381
    %1510 = vst [vmem:[#allocation2 + $0x3c0] sm:$0xff] %v1382
    %1511 = vst [vmem:[#allocation2 + $0x3c8] sm:$0xff] %v1383
    %1512 = vst [vmem:[#allocation2 + $0x3d0] sm:$0xff] %v1384
    %1513 = vst [vmem:[#allocation2 + $0x3d8] sm:$0xff] %v1385
    %1514 = vst [vmem:[#allocation2 + $0x3e0] sm:$0xff] %v1386
    %1515 = vst [vmem:[#allocation2 + $0x3e8] sm:$0xff] %v1387
    %1516 = vst [vmem:[#allocation2 + $0x3f0] sm:$0xff] %v1388
    %1517 = vst [vmem:[#allocation2 + $0x3f8] sm:$0xff] %v1389
    // Predicated region
    $region22: #{tpu_custom_call.1} parent=1 // pred_check
      %p1518 = pneg %p40
    $region23: #{tpu_custom_call.1} parent=1 // pred_check_branch
      %1520 = sbr.rel (%p1518) target = $region25
    $region24: #{tpu_custom_call.1} parent=1 // pred_region
      %v1521 = vld [vmem:[#allocation2] sm:$0xff]
      %v1522 = vld [vmem:[#allocation2 + $0x8] sm:$0xff]
      %v1523 = vld [vmem:[#allocation2 + $0x10] sm:$0xff]
      %v1524 = vld [vmem:[#allocation2 + $0x18] sm:$0xff]
      %v1525 = vld [vmem:[#allocation2 + $0x20] sm:$0xff]
      %v1526 = vld [vmem:[#allocation2 + $0x28] sm:$0xff]
      %v1527 = vld [vmem:[#allocation2 + $0x30] sm:$0xff]
      %v1528 = vld [vmem:[#allocation2 + $0x38] sm:$0xff]
      %v1529 = vld [vmem:[#allocation2 + $0x40] sm:$0xff]
      %v1530 = vld [vmem:[#allocation2 + $0x48] sm:$0xff]
      %v1531 = vld [vmem:[#allocation2 + $0x50] sm:$0xff]
      %v1532 = vld [vmem:[#allocation2 + $0x58] sm:$0xff]
      %v1533 = vld [vmem:[#allocation2 + $0x60] sm:$0xff]
      %v1534 = vld [vmem:[#allocation2 + $0x68] sm:$0xff]
      %v1535 = vld [vmem:[#allocation2 + $0x70] sm:$0xff]
      %v1536 = vld [vmem:[#allocation2 + $0x78] sm:$0xff]
      %v1537 = vld [vmem:[#allocation2 + $0x80] sm:$0xff]
      %v1538 = vld [vmem:[#allocation2 + $0x88] sm:$0xff]
      %v1539 = vld [vmem:[#allocation2 + $0x90] sm:$0xff]
      %v1540 = vld [vmem:[#allocation2 + $0x98] sm:$0xff]
      %v1541 = vld [vmem:[#allocation2 + $0xa0] sm:$0xff]
      %v1542 = vld [vmem:[#allocation2 + $0xa8] sm:$0xff]
      %v1543 = vld [vmem:[#allocation2 + $0xb0] sm:$0xff]
      %v1544 = vld [vmem:[#allocation2 + $0xb8] sm:$0xff]
      %v1545 = vld [vmem:[#allocation2 + $0xc0] sm:$0xff]
      %v1546 = vld [vmem:[#allocation2 + $0xc8] sm:$0xff]
      %v1547 = vld [vmem:[#allocation2 + $0xd0] sm:$0xff]
      %v1548 = vld [vmem:[#allocation2 + $0xd8] sm:$0xff]
      %v1549 = vld [vmem:[#allocation2 + $0xe0] sm:$0xff]
      %v1550 = vld [vmem:[#allocation2 + $0xe8] sm:$0xff]
      %v1551 = vld [vmem:[#allocation2 + $0xf0] sm:$0xff]
      %v1552 = vld [vmem:[#allocation2 + $0xf8] sm:$0xff]
      %v1553 = vld [vmem:[#allocation2 + $0x100] sm:$0xff]
      %v1554 = vld [vmem:[#allocation2 + $0x108] sm:$0xff]
      %v1555 = vld [vmem:[#allocation2 + $0x110] sm:$0xff]
      %v1556 = vld [vmem:[#allocation2 + $0x118] sm:$0xff]
      %v1557 = vld [vmem:[#allocation2 + $0x120] sm:$0xff]
      %v1558 = vld [vmem:[#allocation2 + $0x128] sm:$0xff]
      %v1559 = vld [vmem:[#allocation2 + $0x130] sm:$0xff]
      %v1560 = vld [vmem:[#allocation2 + $0x138] sm:$0xff]
      %v1561 = vld [vmem:[#allocation2 + $0x140] sm:$0xff]
      %v1562 = vld [vmem:[#allocation2 + $0x148] sm:$0xff]
      %v1563 = vld [vmem:[#allocation2 + $0x150] sm:$0xff]
      %v1564 = vld [vmem:[#allocation2 + $0x158] sm:$0xff]
      %v1565 = vld [vmem:[#allocation2 + $0x160] sm:$0xff]
      %v1566 = vld [vmem:[#allocation2 + $0x168] sm:$0xff]
      %v1567 = vld [vmem:[#allocation2 + $0x170] sm:$0xff]
      %v1568 = vld [vmem:[#allocation2 + $0x178] sm:$0xff]
      %v1569 = vld [vmem:[#allocation2 + $0x180] sm:$0xff]
      %v1570 = vld [vmem:[#allocation2 + $0x188] sm:$0xff]
      %v1571 = vld [vmem:[#allocation2 + $0x190] sm:$0xff]
      %v1572 = vld [vmem:[#allocation2 + $0x198] sm:$0xff]
      %v1573 = vld [vmem:[#allocation2 + $0x1a0] sm:$0xff]
      %v1574 = vld [vmem:[#allocation2 + $0x1a8] sm:$0xff]
      %v1575 = vld [vmem:[#allocation2 + $0x1b0] sm:$0xff]
      %v1576 = vld [vmem:[#allocation2 + $0x1b8] sm:$0xff]
      %v1577 = vld [vmem:[#allocation2 + $0x1c0] sm:$0xff]
      %v1578 = vld [vmem:[#allocation2 + $0x1c8] sm:$0xff]
      %v1579 = vld [vmem:[#allocation2 + $0x1d0] sm:$0xff]
      %v1580 = vld [vmem:[#allocation2 + $0x1d8] sm:$0xff]
      %v1581 = vld [vmem:[#allocation2 + $0x1e0] sm:$0xff]
      %v1582 = vld [vmem:[#allocation2 + $0x1e8] sm:$0xff]
      %v1583 = vld [vmem:[#allocation2 + $0x1f0] sm:$0xff]
      %v1584 = vld [vmem:[#allocation2 + $0x1f8] sm:$0xff]
      %v1585 = vld [vmem:[#allocation2 + $0x200] sm:$0xff]
      %v1586 = vld [vmem:[#allocation2 + $0x208] sm:$0xff]
      %v1587 = vld [vmem:[#allocation2 + $0x210] sm:$0xff]
      %v1588 = vld [vmem:[#allocation2 + $0x218] sm:$0xff]
      %v1589 = vld [vmem:[#allocation2 + $0x220] sm:$0xff]
      %v1590 = vld [vmem:[#allocation2 + $0x228] sm:$0xff]
      %v1591 = vld [vmem:[#allocation2 + $0x230] sm:$0xff]
      %v1592 = vld [vmem:[#allocation2 + $0x238] sm:$0xff]
      %v1593 = vld [vmem:[#allocation2 + $0x240] sm:$0xff]
      %v1594 = vld [vmem:[#allocation2 + $0x248] sm:$0xff]
      %v1595 = vld [vmem:[#allocation2 + $0x250] sm:$0xff]
      %v1596 = vld [vmem:[#allocation2 + $0x258] sm:$0xff]
      %v1597 = vld [vmem:[#allocation2 + $0x260] sm:$0xff]
      %v1598 = vld [vmem:[#allocation2 + $0x268] sm:$0xff]
      %v1599 = vld [vmem:[#allocation2 + $0x270] sm:$0xff]
      %v1600 = vld [vmem:[#allocation2 + $0x278] sm:$0xff]
      %v1601 = vld [vmem:[#allocation2 + $0x280] sm:$0xff]
      %v1602 = vld [vmem:[#allocation2 + $0x288] sm:$0xff]
      %v1603 = vld [vmem:[#allocation2 + $0x290] sm:$0xff]
      %v1604 = vld [vmem:[#allocation2 + $0x298] sm:$0xff]
      %v1605 = vld [vmem:[#allocation2 + $0x2a0] sm:$0xff]
      %v1606 = vld [vmem:[#allocation2 + $0x2a8] sm:$0xff]
      %v1607 = vld [vmem:[#allocation2 + $0x2b0] sm:$0xff]
      %v1608 = vld [vmem:[#allocation2 + $0x2b8] sm:$0xff]
      %v1609 = vld [vmem:[#allocation2 + $0x2c0] sm:$0xff]
      %v1610 = vld [vmem:[#allocation2 + $0x2c8] sm:$0xff]
      %v1611 = vld [vmem:[#allocation2 + $0x2d0] sm:$0xff]
      %v1612 = vld [vmem:[#allocation2 + $0x2d8] sm:$0xff]
      %v1613 = vld [vmem:[#allocation2 + $0x2e0] sm:$0xff]
      %v1614 = vld [vmem:[#allocation2 + $0x2e8] sm:$0xff]
      %v1615 = vld [vmem:[#allocation2 + $0x2f0] sm:$0xff]
      %v1616 = vld [vmem:[#allocation2 + $0x2f8] sm:$0xff]
      %v1617 = vld [vmem:[#allocation2 + $0x300] sm:$0xff]
      %v1618 = vld [vmem:[#allocation2 + $0x308] sm:$0xff]
      %v1619 = vld [vmem:[#allocation2 + $0x310] sm:$0xff]
      %v1620 = vld [vmem:[#allocation2 + $0x318] sm:$0xff]
      %v1621 = vld [vmem:[#allocation2 + $0x320] sm:$0xff]
      %v1622 = vld [vmem:[#allocation2 + $0x328] sm:$0xff]
      %v1623 = vld [vmem:[#allocation2 + $0x330] sm:$0xff]
      %v1624 = vld [vmem:[#allocation2 + $0x338] sm:$0xff]
      %v1625 = vld [vmem:[#allocation2 + $0x340] sm:$0xff]
      %v1626 = vld [vmem:[#allocation2 + $0x348] sm:$0xff]
      %v1627 = vld [vmem:[#allocation2 + $0x350] sm:$0xff]
      %v1628 = vld [vmem:[#allocation2 + $0x358] sm:$0xff]
      %v1629 = vld [vmem:[#allocation2 + $0x360] sm:$0xff]
      %v1630 = vld [vmem:[#allocation2 + $0x368] sm:$0xff]
      %v1631 = vld [vmem:[#allocation2 + $0x370] sm:$0xff]
      %v1632 = vld [vmem:[#allocation2 + $0x378] sm:$0xff]
      %v1633 = vld [vmem:[#allocation2 + $0x380] sm:$0xff]
      %v1634 = vld [vmem:[#allocation2 + $0x388] sm:$0xff]
      %v1635 = vld [vmem:[#allocation2 + $0x390] sm:$0xff]
      %v1636 = vld [vmem:[#allocation2 + $0x398] sm:$0xff]
      %v1637 = vld [vmem:[#allocation2 + $0x3a0] sm:$0xff]
      %v1638 = vld [vmem:[#allocation2 + $0x3a8] sm:$0xff]
      %v1639 = vld [vmem:[#allocation2 + $0x3b0] sm:$0xff]
      %v1640 = vld [vmem:[#allocation2 + $0x3b8] sm:$0xff]
      %v1641 = vld [vmem:[#allocation2 + $0x3c0] sm:$0xff]
      %v1642 = vld [vmem:[#allocation2 + $0x3c8] sm:$0xff]
      %v1643 = vld [vmem:[#allocation2 + $0x3d0] sm:$0xff]
      %v1644 = vld [vmem:[#allocation2 + $0x3d8] sm:$0xff]
      %v1645 = vld [vmem:[#allocation2 + $0x3e0] sm:$0xff]
      %v1646 = vld [vmem:[#allocation2 + $0x3e8] sm:$0xff]
      %v1647 = vld [vmem:[#allocation2 + $0x3f0] sm:$0xff]
      %v1648 = vld [vmem:[#allocation2 + $0x3f8] sm:$0xff]
      %v1649 = vpack.c.bf16 %v1525, %v1521
      %v1650 = vpack.c.bf16 %v1526, %v1522
      %v1651 = vpack.c.bf16 %v1527, %v1523
      %v1652 = vpack.c.bf16 %v1528, %v1524
      %v1653 = vpack.c.bf16 %v1533, %v1529
      %v1654 = vpack.c.bf16 %v1534, %v1530
      %v1655 = vpack.c.bf16 %v1535, %v1531
      %v1656 = vpack.c.bf16 %v1536, %v1532
      %v1657 = vpack.c.bf16 %v1541, %v1537
      %v1658 = vpack.c.bf16 %v1542, %v1538
      %v1659 = vpack.c.bf16 %v1543, %v1539
      %v1660 = vpack.c.bf16 %v1544, %v1540
      %v1661 = vpack.c.bf16 %v1549, %v1545
      %v1662 = vpack.c.bf16 %v1550, %v1546
      %v1663 = vpack.c.bf16 %v1551, %v1547
      %v1664 = vpack.c.bf16 %v1552, %v1548
      %v1665 = vpack.c.bf16 %v1557, %v1553
      %v1666 = vpack.c.bf16 %v1558, %v1554
      %v1667 = vpack.c.bf16 %v1559, %v1555
      %v1668 = vpack.c.bf16 %v1560, %v1556
      %v1669 = vpack.c.bf16 %v1565, %v1561
      %v1670 = vpack.c.bf16 %v1566, %v1562
      %v1671 = vpack.c.bf16 %v1567, %v1563
      %v1672 = vpack.c.bf16 %v1568, %v1564
      %v1673 = vpack.c.bf16 %v1573, %v1569
      %v1674 = vpack.c.bf16 %v1574, %v1570
      %v1675 = vpack.c.bf16 %v1575, %v1571
      %v1676 = vpack.c.bf16 %v1576, %v1572
      %v1677 = vpack.c.bf16 %v1581, %v1577
      %v1678 = vpack.c.bf16 %v1582, %v1578
      %v1679 = vpack.c.bf16 %v1583, %v1579
      %v1680 = vpack.c.bf16 %v1584, %v1580
      %v1681 = vpack.c.bf16 %v1589, %v1585
      %v1682 = vpack.c.bf16 %v1590, %v1586
      %v1683 = vpack.c.bf16 %v1591, %v1587
      %v1684 = vpack.c.bf16 %v1592, %v1588
      %v1685 = vpack.c.bf16 %v1597, %v1593
      %v1686 = vpack.c.bf16 %v1598, %v1594
      %v1687 = vpack.c.bf16 %v1599, %v1595
      %v1688 = vpack.c.bf16 %v1600, %v1596
      %v1689 = vpack.c.bf16 %v1605, %v1601
      %v1690 = vpack.c.bf16 %v1606, %v1602
      %v1691 = vpack.c.bf16 %v1607, %v1603
      %v1692 = vpack.c.bf16 %v1608, %v1604
      %v1693 = vpack.c.bf16 %v1613, %v1609
      %v1694 = vpack.c.bf16 %v1614, %v1610
      %v1695 = vpack.c.bf16 %v1615, %v1611
      %v1696 = vpack.c.bf16 %v1616, %v1612
      %v1697 = vpack.c.bf16 %v1621, %v1617
      %v1698 = vpack.c.bf16 %v1622, %v1618
      %v1699 = vpack.c.bf16 %v1623, %v1619
      %v1700 = vpack.c.bf16 %v1624, %v1620
      %v1701 = vpack.c.bf16 %v1629, %v1625
      %v1702 = vpack.c.bf16 %v1630, %v1626
      %v1703 = vpack.c.bf16 %v1631, %v1627
      %v1704 = vpack.c.bf16 %v1632, %v1628
      %v1705 = vpack.c.bf16 %v1637, %v1633
      %v1706 = vpack.c.bf16 %v1638, %v1634
      %v1707 = vpack.c.bf16 %v1639, %v1635
      %v1708 = vpack.c.bf16 %v1640, %v1636
      %v1709 = vpack.c.bf16 %v1645, %v1641
      %v1710 = vpack.c.bf16 %v1646, %v1642
      %v1711 = vpack.c.bf16 %v1647, %v1643
      %v1712 = vpack.c.bf16 %v1648, %v1644
      %v1777 = vunpack.c.l.b16 %v1649
      %v1778 = vunpack.c.l.b16 %v1650
      %v1779 = vunpack.c.l.b16 %v1651
      %v1780 = vunpack.c.l.b16 %v1652
      %v1781 = vunpack.c.h.b16 %v1649
      %v1782 = vunpack.c.h.b16 %v1650
      %v1783 = vunpack.c.h.b16 %v1651
      %v1784 = vunpack.c.h.b16 %v1652
      %v1785 = vunpack.c.l.b16 %v1653
      %v1786 = vunpack.c.l.b16 %v1654
      %v1787 = vunpack.c.l.b16 %v1655
      %v1788 = vunpack.c.l.b16 %v1656
      %v1789 = vunpack.c.h.b16 %v1653
      %v1790 = vunpack.c.h.b16 %v1654
      %v1791 = vunpack.c.h.b16 %v1655
      %v1792 = vunpack.c.h.b16 %v1656
      %v1793 = vunpack.c.l.b16 %v1657
      %v1794 = vunpack.c.l.b16 %v1658
      %v1795 = vunpack.c.l.b16 %v1659
      %v1796 = vunpack.c.l.b16 %v1660
      %v1797 = vunpack.c.h.b16 %v1657
      %v1798 = vunpack.c.h.b16 %v1658
      %v1799 = vunpack.c.h.b16 %v1659
      %v1800 = vunpack.c.h.b16 %v1660
      %v1801 = vunpack.c.l.b16 %v1661
      %v1802 = vunpack.c.l.b16 %v1662
      %v1803 = vunpack.c.l.b16 %v1663
      %v1804 = vunpack.c.l.b16 %v1664
      %v1805 = vunpack.c.h.b16 %v1661
      %v1806 = vunpack.c.h.b16 %v1662
      %v1807 = vunpack.c.h.b16 %v1663
      %v1808 = vunpack.c.h.b16 %v1664
      %v1809 = vunpack.c.l.b16 %v1665
      %v1810 = vunpack.c.l.b16 %v1666
      %v1811 = vunpack.c.l.b16 %v1667
      %v1812 = vunpack.c.l.b16 %v1668
      %v1813 = vunpack.c.h.b16 %v1665
      %v1814 = vunpack.c.h.b16 %v1666
      %v1815 = vunpack.c.h.b16 %v1667
      %v1816 = vunpack.c.h.b16 %v1668
      %v1817 = vunpack.c.l.b16 %v1669
      %v1818 = vunpack.c.l.b16 %v1670
      %v1819 = vunpack.c.l.b16 %v1671
      %v1820 = vunpack.c.l.b16 %v1672
      %v1821 = vunpack.c.h.b16 %v1669
      %v1822 = vunpack.c.h.b16 %v1670
      %v1823 = vunpack.c.h.b16 %v1671
      %v1824 = vunpack.c.h.b16 %v1672
      %v1825 = vunpack.c.l.b16 %v1673
      %v1826 = vunpack.c.l.b16 %v1674
      %v1827 = vunpack.c.l.b16 %v1675
      %v1828 = vunpack.c.l.b16 %v1676
      %v1829 = vunpack.c.h.b16 %v1673
      %v1830 = vunpack.c.h.b16 %v1674
      %v1831 = vunpack.c.h.b16 %v1675
      %v1832 = vunpack.c.h.b16 %v1676
      %v1833 = vunpack.c.l.b16 %v1677
      %v1834 = vunpack.c.l.b16 %v1678
      %v1835 = vunpack.c.l.b16 %v1679
      %v1836 = vunpack.c.l.b16 %v1680
      %v1837 = vunpack.c.h.b16 %v1677
      %v1838 = vunpack.c.h.b16 %v1678
      %v1839 = vunpack.c.h.b16 %v1679
      %v1840 = vunpack.c.h.b16 %v1680
      %v1841 = vunpack.c.l.b16 %v1681
      %v1842 = vunpack.c.l.b16 %v1682
      %v1843 = vunpack.c.l.b16 %v1683
      %v1844 = vunpack.c.l.b16 %v1684
      %v1845 = vunpack.c.h.b16 %v1681
      %v1846 = vunpack.c.h.b16 %v1682
      %v1847 = vunpack.c.h.b16 %v1683
      %v1848 = vunpack.c.h.b16 %v1684
      %v1849 = vunpack.c.l.b16 %v1685
      %v1850 = vunpack.c.l.b16 %v1686
      %v1851 = vunpack.c.l.b16 %v1687
      %v1852 = vunpack.c.l.b16 %v1688
      %v1853 = vunpack.c.h.b16 %v1685
      %v1854 = vunpack.c.h.b16 %v1686
      %v1855 = vunpack.c.h.b16 %v1687
      %v1856 = vunpack.c.h.b16 %v1688
      %v1857 = vunpack.c.l.b16 %v1689
      %v1858 = vunpack.c.l.b16 %v1690
      %v1859 = vunpack.c.l.b16 %v1691
      %v1860 = vunpack.c.l.b16 %v1692
      %v1861 = vunpack.c.h.b16 %v1689
      %v1862 = vunpack.c.h.b16 %v1690
      %v1863 = vunpack.c.h.b16 %v1691
      %v1864 = vunpack.c.h.b16 %v1692
      %v1865 = vunpack.c.l.b16 %v1693
      %v1866 = vunpack.c.l.b16 %v1694
      %v1867 = vunpack.c.l.b16 %v1695
      %v1868 = vunpack.c.l.b16 %v1696
      %v1869 = vunpack.c.h.b16 %v1693
      %v1870 = vunpack.c.h.b16 %v1694
      %v1871 = vunpack.c.h.b16 %v1695
      %v1872 = vunpack.c.h.b16 %v1696
      %v1873 = vunpack.c.l.b16 %v1697
      %v1874 = vunpack.c.l.b16 %v1698
      %v1875 = vunpack.c.l.b16 %v1699
      %v1876 = vunpack.c.l.b16 %v1700
      %v1877 = vunpack.c.h.b16 %v1697
      %v1878 = vunpack.c.h.b16 %v1698
      %v1879 = vunpack.c.h.b16 %v1699
      %v1880 = vunpack.c.h.b16 %v1700
      %v1881 = vunpack.c.l.b16 %v1701
      %v1882 = vunpack.c.l.b16 %v1702
      %v1883 = vunpack.c.l.b16 %v1703
      %v1884 = vunpack.c.l.b16 %v1704
      %v1885 = vunpack.c.h.b16 %v1701
      %v1886 = vunpack.c.h.b16 %v1702
      %v1887 = vunpack.c.h.b16 %v1703
      %v1888 = vunpack.c.h.b16 %v1704
      %v1889 = vunpack.c.l.b16 %v1705
      %v1890 = vunpack.c.l.b16 %v1706
      %v1891 = vunpack.c.l.b16 %v1707
      %v1892 = vunpack.c.l.b16 %v1708
      %v1893 = vunpack.c.h.b16 %v1705
      %v1894 = vunpack.c.h.b16 %v1706
      %v1895 = vunpack.c.h.b16 %v1707
      %v1896 = vunpack.c.h.b16 %v1708
      %v1897 = vunpack.c.l.b16 %v1709
      %v1898 = vunpack.c.l.b16 %v1710
      %v1899 = vunpack.c.l.b16 %v1711
      %v1900 = vunpack.c.l.b16 %v1712
      %v1901 = vunpack.c.h.b16 %v1709
      %v1902 = vunpack.c.h.b16 %v1710
      %v1903 = vunpack.c.h.b16 %v1711
      %v1904 = vunpack.c.h.b16 %v1712
      %v1905 = vpack.c.b16 %v1778, %v1777
      %v1906 = vpack.c.b16 %v1780, %v1779
      %v1907 = vpack.c.b16 %v1782, %v1781
      %v1908 = vpack.c.b16 %v1784, %v1783
      %v1909 = vpack.c.b16 %v1786, %v1785
      %v1910 = vpack.c.b16 %v1788, %v1787
      %v1911 = vpack.c.b16 %v1790, %v1789
      %v1912 = vpack.c.b16 %v1792, %v1791
      %v1913 = vpack.c.b16 %v1794, %v1793
      %v1914 = vpack.c.b16 %v1796, %v1795
      %v1915 = vpack.c.b16 %v1798, %v1797
      %v1916 = vpack.c.b16 %v1800, %v1799
      %v1917 = vpack.c.b16 %v1802, %v1801
      %v1918 = vpack.c.b16 %v1804, %v1803
      %v1919 = vpack.c.b16 %v1806, %v1805
      %v1920 = vpack.c.b16 %v1808, %v1807
      %v1921 = vpack.c.b16 %v1810, %v1809
      %v1922 = vpack.c.b16 %v1812, %v1811
      %v1923 = vpack.c.b16 %v1814, %v1813
      %v1924 = vpack.c.b16 %v1816, %v1815
      %v1925 = vpack.c.b16 %v1818, %v1817
      %v1926 = vpack.c.b16 %v1820, %v1819
      %v1927 = vpack.c.b16 %v1822, %v1821
      %v1928 = vpack.c.b16 %v1824, %v1823
      %v1929 = vpack.c.b16 %v1826, %v1825
      %v1930 = vpack.c.b16 %v1828, %v1827
      %v1931 = vpack.c.b16 %v1830, %v1829
      %v1932 = vpack.c.b16 %v1832, %v1831
      %v1933 = vpack.c.b16 %v1834, %v1833
      %v1934 = vpack.c.b16 %v1836, %v1835
      %v1935 = vpack.c.b16 %v1838, %v1837
      %v1936 = vpack.c.b16 %v1840, %v1839
      %v1937 = vpack.c.b16 %v1842, %v1841
      %v1938 = vpack.c.b16 %v1844, %v1843
      %v1939 = vpack.c.b16 %v1846, %v1845
      %v1940 = vpack.c.b16 %v1848, %v1847
      %v1941 = vpack.c.b16 %v1850, %v1849
      %v1942 = vpack.c.b16 %v1852, %v1851
      %v1943 = vpack.c.b16 %v1854, %v1853
      %v1944 = vpack.c.b16 %v1856, %v1855
      %v1945 = vpack.c.b16 %v1858, %v1857
      %v1946 = vpack.c.b16 %v1860, %v1859
      %v1947 = vpack.c.b16 %v1862, %v1861
      %v1948 = vpack.c.b16 %v1864, %v1863
      %v1949 = vpack.c.b16 %v1866, %v1865
      %v1950 = vpack.c.b16 %v1868, %v1867
      %v1951 = vpack.c.b16 %v1870, %v1869
      %v1952 = vpack.c.b16 %v1872, %v1871
      %v1953 = vpack.c.b16 %v1874, %v1873
      %v1954 = vpack.c.b16 %v1876, %v1875
      %v1955 = vpack.c.b16 %v1878, %v1877
      %v1956 = vpack.c.b16 %v1880, %v1879
      %v1957 = vpack.c.b16 %v1882, %v1881
      %v1958 = vpack.c.b16 %v1884, %v1883
      %v1959 = vpack.c.b16 %v1886, %v1885
      %v1960 = vpack.c.b16 %v1888, %v1887
      %v1961 = vpack.c.b16 %v1890, %v1889
      %v1962 = vpack.c.b16 %v1892, %v1891
      %v1963 = vpack.c.b16 %v1894, %v1893
      %v1964 = vpack.c.b16 %v1896, %v1895
      %v1965 = vpack.c.b16 %v1898, %v1897
      %v1966 = vpack.c.b16 %v1900, %v1899
      %v1967 = vpack.c.b16 %v1902, %v1901
      %v1968 = vpack.c.b16 %v1904, %v1903
      %2033 = vst [vmem:[#allocation8] sm:$0xff] %v1905
      %2034 = vst [vmem:[#allocation8 + $0x8] sm:$0xff] %v1906
      %2035 = vst [vmem:[#allocation8 + $0x10] sm:$0xff] %v1907
      %2036 = vst [vmem:[#allocation8 + $0x18] sm:$0xff] %v1908
      %2037 = vst [vmem:[#allocation8 + $0x20] sm:$0xff] %v1909
      %2038 = vst [vmem:[#allocation8 + $0x28] sm:$0xff] %v1910
      %2039 = vst [vmem:[#allocation8 + $0x30] sm:$0xff] %v1911
      %2040 = vst [vmem:[#allocation8 + $0x38] sm:$0xff] %v1912
      %2041 = vst [vmem:[#allocation8 + $0x40] sm:$0xff] %v1913
      %2042 = vst [vmem:[#allocation8 + $0x48] sm:$0xff] %v1914
      %2043 = vst [vmem:[#allocation8 + $0x50] sm:$0xff] %v1915
      %2044 = vst [vmem:[#allocation8 + $0x58] sm:$0xff] %v1916
      %2045 = vst [vmem:[#allocation8 + $0x60] sm:$0xff] %v1917
      %2046 = vst [vmem:[#allocation8 + $0x68] sm:$0xff] %v1918
      %2047 = vst [vmem:[#allocation8 + $0x70] sm:$0xff] %v1919
      %2048 = vst [vmem:[#allocation8 + $0x78] sm:$0xff] %v1920
      %2049 = vst [vmem:[#allocation8 + $0x80] sm:$0xff] %v1921
      %2050 = vst [vmem:[#allocation8 + $0x88] sm:$0xff] %v1922
      %2051 = vst [vmem:[#allocation8 + $0x90] sm:$0xff] %v1923
      %2052 = vst [vmem:[#allocation8 + $0x98] sm:$0xff] %v1924
      %2053 = vst [vmem:[#allocation8 + $0xa0] sm:$0xff] %v1925
      %2054 = vst [vmem:[#allocation8 + $0xa8] sm:$0xff] %v1926
      %2055 = vst [vmem:[#allocation8 + $0xb0] sm:$0xff] %v1927
      %2056 = vst [vmem:[#allocation8 + $0xb8] sm:$0xff] %v1928
      %2057 = vst [vmem:[#allocation8 + $0xc0] sm:$0xff] %v1929
      %2058 = vst [vmem:[#allocation8 + $0xc8] sm:$0xff] %v1930
      %2059 = vst [vmem:[#allocation8 + $0xd0] sm:$0xff] %v1931
      %2060 = vst [vmem:[#allocation8 + $0xd8] sm:$0xff] %v1932
      %2061 = vst [vmem:[#allocation8 + $0xe0] sm:$0xff] %v1933
      %2062 = vst [vmem:[#allocation8 + $0xe8] sm:$0xff] %v1934
      %2063 = vst [vmem:[#allocation8 + $0xf0] sm:$0xff] %v1935
      %2064 = vst [vmem:[#allocation8 + $0xf8] sm:$0xff] %v1936
      %2065 = vst [vmem:[#allocation8 + $0x100] sm:$0xff] %v1937
      %2066 = vst [vmem:[#allocation8 + $0x108] sm:$0xff] %v1938
      %2067 = vst [vmem:[#allocation8 + $0x110] sm:$0xff] %v1939
      %2068 = vst [vmem:[#allocation8 + $0x118] sm:$0xff] %v1940
      %2069 = vst [vmem:[#allocation8 + $0x120] sm:$0xff] %v1941
      %2070 = vst [vmem:[#allocation8 + $0x128] sm:$0xff] %v1942
      %2071 = vst [vmem:[#allocation8 + $0x130] sm:$0xff] %v1943
      %2072 = vst [vmem:[#allocation8 + $0x138] sm:$0xff] %v1944
      %2073 = vst [vmem:[#allocation8 + $0x140] sm:$0xff] %v1945
      %2074 = vst [vmem:[#allocation8 + $0x148] sm:$0xff] %v1946
      %2075 = vst [vmem:[#allocation8 + $0x150] sm:$0xff] %v1947
      %2076 = vst [vmem:[#allocation8 + $0x158] sm:$0xff] %v1948
      %2077 = vst [vmem:[#allocation8 + $0x160] sm:$0xff] %v1949
      %2078 = vst [vmem:[#allocation8 + $0x168] sm:$0xff] %v1950
      %2079 = vst [vmem:[#allocation8 + $0x170] sm:$0xff] %v1951
      %2080 = vst [vmem:[#allocation8 + $0x178] sm:$0xff] %v1952
      %2081 = vst [vmem:[#allocation8 + $0x180] sm:$0xff] %v1953
      %2082 = vst [vmem:[#allocation8 + $0x188] sm:$0xff] %v1954
      %2083 = vst [vmem:[#allocation8 + $0x190] sm:$0xff] %v1955
      %2084 = vst [vmem:[#allocation8 + $0x198] sm:$0xff] %v1956
      %2085 = vst [vmem:[#allocation8 + $0x1a0] sm:$0xff] %v1957
      %2086 = vst [vmem:[#allocation8 + $0x1a8] sm:$0xff] %v1958
      %2087 = vst [vmem:[#allocation8 + $0x1b0] sm:$0xff] %v1959
      %2088 = vst [vmem:[#allocation8 + $0x1b8] sm:$0xff] %v1960
      %2089 = vst [vmem:[#allocation8 + $0x1c0] sm:$0xff] %v1961
      %2090 = vst [vmem:[#allocation8 + $0x1c8] sm:$0xff] %v1962
      %2091 = vst [vmem:[#allocation8 + $0x1d0] sm:$0xff] %v1963
      %2092 = vst [vmem:[#allocation8 + $0x1d8] sm:$0xff] %v1964
      %2093 = vst [vmem:[#allocation8 + $0x1e0] sm:$0xff] %v1965
      %2094 = vst [vmem:[#allocation8 + $0x1e8] sm:$0xff] %v1966
      %2095 = vst [vmem:[#allocation8 + $0x1f0] sm:$0xff] %v1967
      %2096 = vst [vmem:[#allocation8 + $0x1f8] sm:$0xff] %v1968
    $region25: #{tpu_custom_call.1} parent=1 // pred_fallthru
      _
    // Predicated region
    $region26: #{tpu_custom_call.1} parent=1 // pred_check
      _
    $region27: #{tpu_custom_call.1} parent=1 // pred_check_branch
      %2098 = sbr.rel (0) target = $region29
    $region28: #{tpu_custom_call.1} parent=1 // pred_region
      %s2100 = ssub.s32 8192, 8192
      %2101 = vsyncadd [#allocation5], %s2100
      %s2102 = sshll.u32 [#allocation8], 4
      %s2103 = int_to_ptr.vmem [resolvable:$true] %s2102
      %2108 = dma.vmem_to_hbm [thread:$0]  %s2103, 8192, %s2, [#allocation5], 256, 256, 16
    $region29: #{tpu_custom_call.1} parent=1 // pred_fallthru
      _
    // Predicated region
    $region30: #{tpu_custom_call.1} parent=1 // pred_check
      _
    $region31: #{tpu_custom_call.1} parent=1 // pred_check_branch
      %2110 = sbr.rel (0) target = $region33
    $region32: #{tpu_custom_call.1} parent=1 // pred_region
      %2111 = dma.done [#allocation5], 8192
    $region33: #{tpu_custom_call.1} parent=1 // pred_fallthru
      _
    %2112 = vsyncpa [#allocation4], 1
    %2113 = vsyncpa [#allocation7], 1
    %2114 = vsyncpa [#allocation5], 1

</llo_original>
